<compile_context>
chip_gen: v7x
topology: tpu7x:2x2x1
jax: 0.10.0
libtpu: 0.0.40
codegen_flags: <defaults>
</compile_context>

<pallas_src>
import math

import jax
import jax.numpy as jnp
from jax.experimental import pallas as pl
from jax.experimental.pallas import tpu as pltpu

BN_EPS = 1e-5
_VMEM_LIMIT = 32 * 1024 * 1024


def _round_up(x, mult):
    return ((x + mult - 1) // mult) * mult


def _pick_tile_m(m):
    # TILE_M must be a multiple of 128 (lane-dense stores); cap at 512.
    if m >= 512:
        return 512
    return _round_up(m, 128)


# -----------------------------------------------------------------------------
# Kernel 1: fused 1x1 conv -> ReLU -> 1x1 conv (body[0], body[1], body[2]).
# Channel-major: x (Cin, TM), w1 (C1, Cin), w2 (C2, C1); out (C2, TM).
# -----------------------------------------------------------------------------
def _bottleneck_kernel(x_ref, w1_ref, b1_ref, w2_ref, b2_ref, o_ref, h_ref):
    h = jnp.dot(w1_ref[...], x_ref[0], preferred_element_type=jnp.float32)
    h = jnp.maximum(h + b1_ref[...], 0.0)           # conv1 bias + ReLU
    h_ref[...] = h.astype(jnp.bfloat16)             # wide intermediate stays in VMEM
    y = jnp.dot(w2_ref[...], h_ref[...], preferred_element_type=jnp.float32)
    o_ref[0] = (y + b2_ref[...]).astype(o_ref.dtype)


def _bottleneck_call(x_t, w1, b1, w2, b2, *, tile_m):
    n, cin, m_pad = x_t.shape
    c1 = w1.shape[0]
    c2 = w2.shape[0]
    grid = (n, m_pad // tile_m)
    return pl.pallas_call(
        _bottleneck_kernel,
        out_shape=jax.ShapeDtypeStruct((n, c2, m_pad), jnp.bfloat16),
        grid=grid,
        in_specs=[
            pl.BlockSpec((1, cin, tile_m), lambda b, i: (b, 0, i)),
            pl.BlockSpec((c1, cin), lambda b, i: (0, 0)),
            pl.BlockSpec((c1, 1), lambda b, i: (0, 0)),
            pl.BlockSpec((c2, c1), lambda b, i: (0, 0)),
            pl.BlockSpec((c2, 1), lambda b, i: (0, 0)),
        ],
        out_specs=pl.BlockSpec((1, c2, tile_m), lambda b, i: (b, 0, i)),
        scratch_shapes=[pltpu.VMEM((c1, tile_m), jnp.bfloat16)],
        compiler_params=pltpu.CompilerParams(
            dimension_semantics=("parallel", "parallel"),
            vmem_limit_bytes=_VMEM_LIMIT),
    )(x_t, w1, b1, w2, b2)


# -----------------------------------------------------------------------------
# Kernel 2: fused  res_scale * (3x3 conv)  +  x_scale * relu(BN(1x1 skip conv)).
# The 3x3 conv is a single GEMM over K = 9*C (taps folded); res_scale and the BN
# scale are pre-folded into the weights in the wrapper.
# -----------------------------------------------------------------------------
def _final_kernel(xs3_ref, w3_ref, b3_ref, xin_ref, ws_ref, bs_ref, xsc_ref,
                  o_ref):
    body = jnp.dot(w3_ref[...], xs3_ref[0],
                   preferred_element_type=jnp.float32) + b3_ref[...]
    skip = jnp.dot(ws_ref[...], xin_ref[0],
                   preferred_element_type=jnp.float32) + bs_ref[...]
    skip = jnp.maximum(skip, 0.0) * xsc_ref[...]     # ReLU then x_scale
    o_ref[0] = (body + skip).astype(o_ref.dtype)


def _final_call(xs3, w3, b3, x_t, ws, bs, x_sc, *, tile_m):
    n, k3, m_pad = xs3.shape
    cin = x_t.shape[1]
    c2 = w3.shape[0]
    grid = (n, m_pad // tile_m)
    return pl.pallas_call(
        _final_kernel,
        out_shape=jax.ShapeDtypeStruct((n, c2, m_pad), jnp.float32),
        grid=grid,
        in_specs=[
            pl.BlockSpec((1, k3, tile_m), lambda b, i: (b, 0, i)),
            pl.BlockSpec((c2, k3), lambda b, i: (0, 0)),
            pl.BlockSpec((c2, 1), lambda b, i: (0, 0)),
            pl.BlockSpec((1, cin, tile_m), lambda b, i: (b, 0, i)),
            pl.BlockSpec((c2, cin), lambda b, i: (0, 0)),
            pl.BlockSpec((c2, 1), lambda b, i: (0, 0)),
            pl.BlockSpec((1, 1), lambda b, i: (0, 0)),
        ],
        out_specs=pl.BlockSpec((1, c2, tile_m), lambda b, i: (b, 0, i)),
        compiler_params=pltpu.CompilerParams(
            dimension_semantics=("parallel", "parallel"),
            vmem_limit_bytes=_VMEM_LIMIT),
    )(xs3, w3, b3, x_t, ws, bs, x_sc)


# -----------------------------------------------------------------------------
# Parameter construction (deterministic, mirrors WCRW.__init__ structure).
# Conv weights stored PyTorch-style (cout, cin[, kh, kw]).
# -----------------------------------------------------------------------------
def init_wcrw(key, n_feats=32):
    c_mid = n_feats * 6
    c_half = n_feats // 2
    ks = jax.random.split(key, 8)

    def u(k, shape, fan_in):
        bound = 1.0 / math.sqrt(fan_in)
        return jax.random.uniform(k, shape, jnp.float32, minval=-bound,
                                  maxval=bound)

    return {
        # body[0]: weight_norm(Conv2d(n_feats, 6*n_feats, 1))  (wn folded: identity at init)
        "w1": u(ks[0], (c_mid, n_feats), n_feats),
        "b1": u(ks[1], (c_mid,), n_feats),
        # body[2]: weight_norm(Conv2d(6*n_feats, n_feats//2, 1))
        "w2": u(ks[2], (c_half, c_mid), c_mid),
        "b2": u(ks[3], (c_half,), c_mid),
        # body[3]: weight_norm(Conv2d(n_feats//2, n_feats//2, 3, padding=1))
        "w3": u(ks[4], (c_half, c_half, 3, 3), c_half * 9),
        "b3": u(ks[5], (c_half,), c_half * 9),
        # skip: BasicConv2d = Conv2d(n_feats, n_feats//2, 1, bias=False) + BN + ReLU
        "ws": u(ks[6], (c_half, n_feats), n_feats),
        "bn_gamma": jnp.ones((c_half,), jnp.float32),
        "bn_beta": jnp.zeros((c_half,), jnp.float32),
        "bn_mean": jnp.zeros((c_half,), jnp.float32),
        "bn_var": jnp.ones((c_half,), jnp.float32),
        # Scale modules (init_value = 1)
        "res_scale": jnp.ones((1,), jnp.float32),
        "x_scale": jnp.ones((1,), jnp.float32),
    }


# -----------------------------------------------------------------------------
# Forward pass:  y = res_scale(body(x)) + x_scale(BasicConv2d(x))
# -----------------------------------------------------------------------------
def wcrw_forward(params, x):
    n, cin, h, w = x.shape
    c_half = params["w2"].shape[0]
    m = h * w
    tile_m = _pick_tile_m(m)
    m_pad = _round_up(m, tile_m)

    # Channel-major flat activations: NCHW -> (N, C, H*W) is just a reshape.
    x_t = x.reshape(n, cin, m)
    x_t = jnp.pad(x_t, ((0, 0), (0, 0), (0, m_pad - m))).astype(jnp.bfloat16)

    w1 = params["w1"].astype(jnp.bfloat16)
    b1 = params["b1"].reshape(-1, 1)
    w2 = params["w2"].astype(jnp.bfloat16)
    b2 = params["b2"].reshape(-1, 1)

    # body[0..2] fused: (N, c_half, m_pad) in bf16
    y2 = _bottleneck_call(x_t, w1, b1, w2, b2, tile_m=tile_m)
    y2 = y2[:, :, :m].reshape(n, c_half, h, w)

    # im2col (bf16, channel-major) for the 3x3 / padding=1 conv: K = 9*c_half.
    # TODO(synk): tap extraction still materializes 9x the (small) c_half tensor in
    # HBM; a haloed manual-DMA variant would remove even that.
    y2p = jnp.pad(y2, ((0, 0), (0, 0), (1, 1), (1, 1)))
    xs3 = jnp.concatenate(
        [y2p[:, :, i:i + h, j:j + w] for i in range(3) for j in range(3)],
        axis=1).reshape(n, 9 * c_half, m)
    xs3 = jnp.pad(xs3, ((0, 0), (0, 0), (0, m_pad - m)))

    # Fold res_scale (Scale module) into the 3x3 conv; fold BN into the skip conv.
    res_scale = params["res_scale"][0]
    w3 = (jnp.transpose(params["w3"], (0, 2, 3, 1)).reshape(c_half, 9 * c_half)
          * res_scale).astype(jnp.bfloat16)
    b3 = (params["b3"] * res_scale).reshape(-1, 1)

    bn_scale = params["bn_gamma"] / jnp.sqrt(params["bn_var"] + BN_EPS)
    bn_bias = params["bn_beta"] - params["bn_mean"] * bn_scale
    ws = (params["ws"] * bn_scale[:, None]).astype(jnp.bfloat16)
    bs = bn_bias.reshape(-1, 1)
    x_sc = params["x_scale"].reshape(1, 1)

    out = _final_call(xs3, w3, b3, x_t, ws, bs, x_sc, tile_m=tile_m)
    return out[:, :, :m].reshape(n, c_half, h, w)


if __name__ == "__main__":
    key = jax.random.PRNGKey(0)
    pkey, xkey = jax.random.split(key)

    n_feats = 32
    params = init_wcrw(pkey, n_feats=n_feats)

    N, H, W = 2, 16, 16
    x = jax.random.normal(xkey, (N, n_feats, H, W), dtype=jnp.float32)

    out = jax.jit(wcrw_forward)(params, x)
    out = jax.block_until_ready(out)

    assert out.shape == (N, n_feats // 2, H, W), out.shape
    assert bool(jnp.isfinite(out).all())
    print("KERNEL_OK")
</pallas_src>

<mosaic_0001>
module attributes {stable_mosaic.version = 11 : i64} {
  func.func @_bottleneck_kernel(%arg0: i32, %arg1: i32, %arg2: memref<1x32x256xbf16, #tpu.memory_space<vmem>>, %arg3: memref<192x32xbf16, #tpu.memory_space<vmem>>, %arg4: memref<192x1xf32, #tpu.memory_space<vmem>>, %arg5: memref<16x192xbf16, #tpu.memory_space<vmem>>, %arg6: memref<16x1xf32, #tpu.memory_space<vmem>>, %arg7: memref<1x16x256xbf16, #tpu.memory_space<vmem>>, %arg8: memref<192x256xbf16, #tpu.memory_space<vmem>>) attributes {dimension_semantics = [#tpu.dimension_semantics<parallel>, #tpu.dimension_semantics<parallel>], iteration_bounds = array<i64: 2, 1>, scalar_prefetch = 0 : i64, scratch_operands = 1 : i64, tpu.core_type = #tpu.core_type<tc>, window_params = [{transform_indices = @transform_0, window_bounds = array<i64: 1, 32, 256>}, {pipeline_mode = #tpu.pipeline_mode<synchronous>, transform_indices = @transform_1, window_bounds = array<i64: 192, 32>}, {pipeline_mode = #tpu.pipeline_mode<synchronous>, transform_indices = @transform_2, window_bounds = array<i64: 192, 1>}, {pipeline_mode = #tpu.pipeline_mode<synchronous>, transform_indices = @transform_3, window_bounds = array<i64: 16, 192>}, {pipeline_mode = #tpu.pipeline_mode<synchronous>, transform_indices = @transform_4, window_bounds = array<i64: 16, 1>}, {transform_indices = @transform_5, window_bounds = array<i64: 1, 16, 256>}]} {
    %c0 = arith.constant 0 : index
    %c0_0 = arith.constant 0 : index
    %0 = vector.load %arg3[%c0, %c0_0] : memref<192x32xbf16, #tpu.memory_space<vmem>>, vector<192x32xbf16>
    %c0_1 = arith.constant 0 : index
    %c0_2 = arith.constant 0 : index
    %c0_3 = arith.constant 0 : index
    %1 = vector.load %arg2[%c0_1, %c0_2, %c0_3] : memref<1x32x256xbf16, #tpu.memory_space<vmem>>, vector<1x32x256xbf16>
    %2 = vector.shape_cast %1 : vector<1x32x256xbf16> to vector<32x256xbf16>
    %cst = arith.constant dense<0.000000e+00> : vector<192x256xf32>
    %3 = tpu.matmul %0, %2, %cst {dimension_numbers = #tpu.dot_dimension_numbers<[1], [0], [0], [1], [0, 0, 1, 1], [], []>} : vector<192x32xbf16>, vector<32x256xbf16>, vector<192x256xf32> -> vector<192x256xf32>
    %c0_4 = arith.constant 0 : index
    %c0_5 = arith.constant 0 : index
    %4 = vector.load %arg4[%c0_4, %c0_5] : memref<192x1xf32, #tpu.memory_space<vmem>>, vector<192x1xf32>
    %5 = vector.broadcast %4 : vector<192x1xf32> to vector<192x256xf32>
    %6 = arith.addf %3, %5 : vector<192x256xf32>
    %cst_6 = arith.constant 0.000000e+00 : f32
    %7 = vector.broadcast %cst_6 : f32 to vector<192x256xf32>
    %8 = arith.maximumf %6, %7 : vector<192x256xf32>
    %9 = arith.truncf %8 : vector<192x256xf32> to vector<192x256xbf16>
    %c0_7 = arith.constant 0 : index
    %c0_8 = arith.constant 0 : index
    %10 = vector.load %arg8[%c0_7, %c0_8] : memref<192x256xbf16, #tpu.memory_space<vmem>>, vector<192x256xbf16>
    tpu.vector_store %arg8[%c0_7, %c0_8], %9 {strides = array<i32>} : memref<192x256xbf16, #tpu.memory_space<vmem>>, vector<192x256xbf16>,
    %c0_9 = arith.constant 0 : index
    %c0_10 = arith.constant 0 : index
    %11 = vector.load %arg5[%c0_9, %c0_10] : memref<16x192xbf16, #tpu.memory_space<vmem>>, vector<16x192xbf16>
    %c0_11 = arith.constant 0 : index
    %c0_12 = arith.constant 0 : index
    %12 = vector.load %arg8[%c0_11, %c0_12] : memref<192x256xbf16, #tpu.memory_space<vmem>>, vector<192x256xbf16>
    %cst_13 = arith.constant dense<0.000000e+00> : vector<16x256xf32>
    %13 = tpu.matmul %11, %12, %cst_13 {dimension_numbers = #tpu.dot_dimension_numbers<[1], [0], [0], [1], [0, 0, 1, 1], [], []>} : vector<16x192xbf16>, vector<192x256xbf16>, vector<16x256xf32> -> vector<16x256xf32>
    %c0_14 = arith.constant 0 : index
    %c0_15 = arith.constant 0 : index
    %14 = vector.load %arg6[%c0_14, %c0_15] : memref<16x1xf32, #tpu.memory_space<vmem>>, vector<16x1xf32>
    %15 = vector.broadcast %14 : vector<16x1xf32> to vector<16x256xf32>
    %16 = arith.addf %13, %15 : vector<16x256xf32>
    %17 = arith.truncf %16 : vector<16x256xf32> to vector<16x256xbf16>
    %c0_16 = arith.constant 0 : index
    %c0_17 = arith.constant 0 : index
    %c0_18 = arith.constant 0 : index
    %18 = vector.load %arg7[%c0_16, %c0_17, %c0_18] : memref<1x16x256xbf16, #tpu.memory_space<vmem>>, vector<1x16x256xbf16>
    %19 = vector.shape_cast %18 : vector<1x16x256xbf16> to vector<16x256xbf16>
    %20 = vector.shape_cast %17 : vector<16x256xbf16> to vector<1x16x256xbf16>
    tpu.vector_store %arg7[%c0_16, %c0_17, %c0_18], %20 {strides = array<i32>} : memref<1x16x256xbf16, #tpu.memory_space<vmem>>, vector<1x16x256xbf16>,
    return
  }
  func.func @transform_0(%arg0: i32, %arg1: i32) -> (i32, i32, i32) {
    %c0_i32 = arith.constant 0 : i32
    %c0_i32_0 = arith.constant 0 : i32
    return %arg0, %c0_i32, %arg1 : i32, i32, i32
  }
  func.func @transform_1(%arg0: i32, %arg1: i32) -> (i32, i32) {
    %c0_i32 = arith.constant 0 : i32
    %c0_i32_0 = arith.constant 0 : i32
    %c0_i32_1 = arith.constant 0 : i32
    return %c0_i32, %c0_i32_0 : i32, i32
  }
  func.func @transform_2(%arg0: i32, %arg1: i32) -> (i32, i32) {
    %c0_i32 = arith.constant 0 : i32
    %c0_i32_0 = arith.constant 0 : i32
    %c0_i32_1 = arith.constant 0 : i32
    return %c0_i32, %c0_i32_0 : i32, i32
  }
  func.func @transform_3(%arg0: i32, %arg1: i32) -> (i32, i32) {
    %c0_i32 = arith.constant 0 : i32
    %c0_i32_0 = arith.constant 0 : i32
    %c0_i32_1 = arith.constant 0 : i32
    return %c0_i32, %c0_i32_0 : i32, i32
  }
  func.func @transform_4(%arg0: i32, %arg1: i32) -> (i32, i32) {
    %c0_i32 = arith.constant 0 : i32
    %c0_i32_0 = arith.constant 0 : i32
    %c0_i32_1 = arith.constant 0 : i32
    return %c0_i32, %c0_i32_0 : i32, i32
  }
  func.func @transform_5(%arg0: i32, %arg1: i32) -> (i32, i32, i32) {
    %c0_i32 = arith.constant 0 : i32
    %c0_i32_0 = arith.constant 0 : i32
    return %arg0, %c0_i32, %arg1 : i32, i32, i32
  }
}

module attributes {stable_mosaic.version = 11 : i64} {
  func.func @_final_kernel(%arg0: i32, %arg1: i32, %arg2: memref<1x144x256xbf16, #tpu.memory_space<vmem>>, %arg3: memref<16x144xbf16, #tpu.memory_space<vmem>>, %arg4: memref<16x1xf32, #tpu.memory_space<vmem>>, %arg5: memref<1x32x256xbf16, #tpu.memory_space<vmem>>, %arg6: memref<16x32xbf16, #tpu.memory_space<vmem>>, %arg7: memref<16x1xf32, #tpu.memory_space<vmem>>, %arg8: memref<1x1xf32, #tpu.memory_space<vmem>>, %arg9: memref<1x16x256xf32, #tpu.memory_space<vmem>>) attributes {dimension_semantics = [#tpu.dimension_semantics<parallel>, #tpu.dimension_semantics<parallel>], iteration_bounds = array<i64: 2, 1>, scalar_prefetch = 0 : i64, scratch_operands = 0 : i64, tpu.core_type = #tpu.core_type<tc>, window_params = [{transform_indices = @transform_0, window_bounds = array<i64: 1, 144, 256>}, {pipeline_mode = #tpu.pipeline_mode<synchronous>, transform_indices = @transform_1, window_bounds = array<i64: 16, 144>}, {pipeline_mode = #tpu.pipeline_mode<synchronous>, transform_indices = @transform_2, window_bounds = array<i64: 16, 1>}, {transform_indices = @transform_3, window_bounds = array<i64: 1, 32, 256>}, {pipeline_mode = #tpu.pipeline_mode<synchronous>, transform_indices = @transform_4, window_bounds = array<i64: 16, 32>}, {pipeline_mode = #tpu.pipeline_mode<synchronous>, transform_indices = @transform_5, window_bounds = array<i64: 16, 1>}, {pipeline_mode = #tpu.pipeline_mode<synchronous>, transform_indices = @transform_6, window_bounds = array<i64: 1, 1>}, {transform_indices = @transform_7, window_bounds = array<i64: 1, 16, 256>}]} {
    %c0 = arith.constant 0 : index
    %c0_0 = arith.constant 0 : index
    %0 = vector.load %arg3[%c0, %c0_0] : memref<16x144xbf16, #tpu.memory_space<vmem>>, vector<16x144xbf16>
    %c0_1 = arith.constant 0 : index
    %c0_2 = arith.constant 0 : index
    %c0_3 = arith.constant 0 : index
    %1 = vector.load %arg2[%c0_1, %c0_2, %c0_3] : memref<1x144x256xbf16, #tpu.memory_space<vmem>>, vector<1x144x256xbf16>
    %2 = vector.shape_cast %1 : vector<1x144x256xbf16> to vector<144x256xbf16>
    %cst = arith.constant dense<0.000000e+00> : vector<16x256xf32>
    %3 = tpu.matmul %0, %2, %cst {dimension_numbers = #tpu.dot_dimension_numbers<[1], [0], [0], [1], [0, 0, 1, 1], [], []>} : vector<16x144xbf16>, vector<144x256xbf16>, vector<16x256xf32> -> vector<16x256xf32>
    %c0_4 = arith.constant 0 : index
    %c0_5 = arith.constant 0 : index
    %4 = vector.load %arg4[%c0_4, %c0_5] : memref<16x1xf32, #tpu.memory_space<vmem>>, vector<16x1xf32>
    %5 = vector.broadcast %4 : vector<16x1xf32> to vector<16x256xf32>
    %6 = arith.addf %3, %5 : vector<16x256xf32>
    %c0_6 = arith.constant 0 : index
    %c0_7 = arith.constant 0 : index
    %7 = vector.load %arg6[%c0_6, %c0_7] : memref<16x32xbf16, #tpu.memory_space<vmem>>, vector<16x32xbf16>
    %c0_8 = arith.constant 0 : index
    %c0_9 = arith.constant 0 : index
    %c0_10 = arith.constant 0 : index
    %8 = vector.load %arg5[%c0_8, %c0_9, %c0_10] : memref<1x32x256xbf16, #tpu.memory_space<vmem>>, vector<1x32x256xbf16>
    %9 = vector.shape_cast %8 : vector<1x32x256xbf16> to vector<32x256xbf16>
    %cst_11 = arith.constant dense<0.000000e+00> : vector<16x256xf32>
    %10 = tpu.matmul %7, %9, %cst_11 {dimension_numbers = #tpu.dot_dimension_numbers<[1], [0], [0], [1], [0, 0, 1, 1], [], []>} : vector<16x32xbf16>, vector<32x256xbf16>, vector<16x256xf32> -> vector<16x256xf32>
    %c0_12 = arith.constant 0 : index
    %c0_13 = arith.constant 0 : index
    %11 = vector.load %arg7[%c0_12, %c0_13] : memref<16x1xf32, #tpu.memory_space<vmem>>, vector<16x1xf32>
    %12 = vector.broadcast %11 : vector<16x1xf32> to vector<16x256xf32>
    %13 = arith.addf %10, %12 : vector<16x256xf32>
    %cst_14 = arith.constant 0.000000e+00 : f32
    %14 = vector.broadcast %cst_14 : f32 to vector<16x256xf32>
    %15 = arith.maximumf %13, %14 : vector<16x256xf32>
    %c0_15 = arith.constant 0 : index
    %c0_16 = arith.constant 0 : index
    %16 = vector.load %arg8[%c0_15, %c0_16] : memref<1x1xf32, #tpu.memory_space<vmem>>, vector<1x1xf32>
    %17 = vector.broadcast %16 : vector<1x1xf32> to vector<16x256xf32>
    %18 = arith.mulf %15, %17 : vector<16x256xf32>
    %19 = arith.addf %6, %18 : vector<16x256xf32>
    %c0_17 = arith.constant 0 : index
    %c0_18 = arith.constant 0 : index
    %c0_19 = arith.constant 0 : index
    %20 = vector.load %arg9[%c0_17, %c0_18, %c0_19] : memref<1x16x256xf32, #tpu.memory_space<vmem>>, vector<1x16x256xf32>
    %21 = vector.shape_cast %20 : vector<1x16x256xf32> to vector<16x256xf32>
    %22 = vector.shape_cast %19 : vector<16x256xf32> to vector<1x16x256xf32>
    tpu.vector_store %arg9[%c0_17, %c0_18, %c0_19], %22 {strides = array<i32>} : memref<1x16x256xf32, #tpu.memory_space<vmem>>, vector<1x16x256xf32>,
    return
  }
  func.func @transform_0(%arg0: i32, %arg1: i32) -> (i32, i32, i32) {
    %c0_i32 = arith.constant 0 : i32
    %c0_i32_0 = arith.constant 0 : i32
    return %arg0, %c0_i32, %arg1 : i32, i32, i32
  }
  func.func @transform_1(%arg0: i32, %arg1: i32) -> (i32, i32) {
    %c0_i32 = arith.constant 0 : i32
    %c0_i32_0 = arith.constant 0 : i32
    %c0_i32_1 = arith.constant 0 : i32
    return %c0_i32, %c0_i32_0 : i32, i32
  }
  func.func @transform_2(%arg0: i32, %arg1: i32) -> (i32, i32) {
    %c0_i32 = arith.constant 0 : i32
    %c0_i32_0 = arith.constant 0 : i32
    %c0_i32_1 = arith.constant 0 : i32
    return %c0_i32, %c0_i32_0 : i32, i32
  }
  func.func @transform_3(%arg0: i32, %arg1: i32) -> (i32, i32, i32) {
    %c0_i32 = arith.constant 0 : i32
    %c0_i32_0 = arith.constant 0 : i32
    return %arg0, %c0_i32, %arg1 : i32, i32, i32
  }
  func.func @transform_4(%arg0: i32, %arg1: i32) -> (i32, i32) {
    %c0_i32 = arith.constant 0 : i32
    %c0_i32_0 = arith.constant 0 : i32
    %c0_i32_1 = arith.constant 0 : i32
    return %c0_i32, %c0_i32_0 : i32, i32
  }
  func.func @transform_5(%arg0: i32, %arg1: i32) -> (i32, i32) {
    %c0_i32 = arith.constant 0 : i32
    %c0_i32_0 = arith.constant 0 : i32
    %c0_i32_1 = arith.constant 0 : i32
    return %c0_i32, %c0_i32_0 : i32, i32
  }
  func.func @transform_6(%arg0: i32, %arg1: i32) -> (i32, i32) {
    %c0_i32 = arith.constant 0 : i32
    %c0_i32_0 = arith.constant 0 : i32
    %c0_i32_1 = arith.constant 0 : i32
    return %c0_i32, %c0_i32_0 : i32, i32
  }
  func.func @transform_7(%arg0: i32, %arg1: i32) -> (i32, i32, i32) {
    %c0_i32 = arith.constant 0 : i32
    %c0_i32_0 = arith.constant 0 : i32
    return %arg0, %c0_i32, %arg1 : i32, i32, i32
  }
}

</mosaic_0001>

<llo_original>
// kernel: wcrw_forward.2
$region0: #{wcrw_forward.2}
  #allocation0 [shape = 'u32[]', space=smem, size = 0x4, offset = 0x4, fixed_abs, tag = 'smem constant byte address 0x4 - core index']
  #allocation1 [shape = 'u32[144,128]{1,0:T(1,128)}', space=vmem, size = 0x12000, scoped, tag = 'internal scratch']
  #allocation2 [shape = 'bf16[192,256]{1,0:T(16,128)(2,1)}', space=vmem, size = 0x18000, scoped, tag = 'scratch operand']
  %s0 = inlined_call_operand.vmem [shape: bf16[2,32,256], index: 0, kind: input, shape index: {}]
  %s1 = inlined_call_operand.vmem [shape: bf16[192,32], index: 1, kind: input, shape index: {}]
  %s2 = inlined_call_operand.vmem [shape: f32[192,1], index: 2, kind: input, shape index: {}]
  %s3 = inlined_call_operand.vmem [shape: bf16[16,192], index: 3, kind: input, shape index: {}]
  %s4 = inlined_call_operand.vmem [shape: f32[16,1], index: 4, kind: input, shape index: {}]
  %s5 = inlined_call_operand.vmem [shape: bf16[2,16,256], index: 5, kind: output, shape index: {}]
  %s6 = sld [smem:[#allocation0]]
  $region53: #{wcrw_forward.2} parent=0
    _
  %s8 = ssub.s32 1, %s6
  %s9 = scalar_select 0, %s8, %s6
  loop: start=0, step=1, limit=4
  $region2: #{wcrw_forward.2} parent=0 // loop_pre_header
    _
  $region3: #{wcrw_forward.2} parent=0 // loop_header
    %s11 = sphi 0, %s15
    %p12 = scmp.ge.s32.totalorder %s11, 4
    %s18 = sphi 0, %s30
    %s19 = sphi 0, %s26
    %s20 = sphi 0, %s18
    %s21 = sphi 0, %s19
    %s22 = sphi 0, %s20
    %s23 = sphi 0, %s21
    %s35 = sphi 0, %s37
    %s38 = sphi 0, %s35
    %s39 = sphi 0, %s38
    %s55 = sphi 0, %s39
    %s59 = sphi 0, %s59
    %s61 = sphi 0, %s59
    %s62 = sphi 0, %s61
    %s76 = sphi 0, %s62
    %s80 = sphi 0, %s80
    %s82 = sphi 0, %s80
    %s83 = sphi 0, %s82
    %s97 = sphi 0, %s83
    %s101 = sphi 0, %s101
    %s103 = sphi 0, %s101
    %s104 = sphi 0, %s103
    %s118 = sphi 0, %s104
    %s122 = sphi 0, %s122
    %s124 = sphi 0, %s122
    %s125 = sphi 0, %s124
    %s139 = sphi 0, %s125
    %s147 = sphi 0, %s149
    %s150 = sphi 0, %s147
    %s151 = sphi 0, %s150
    %s167 = sphi 0, %s151
  $region4: #{wcrw_forward.2} parent=0 // loop_header_branch
    %14 = sbr.rel (%p12) target = $region8
  $region5: #{wcrw_forward.2} parent=0 // loop_body
    %s16 = ssub.s32 %s11, 1
    %s17 = ssub.s32 %s11, 2
    %s24 = sadd.s32 1, %s19
    %p25 = scmp.ge.s32.totalorder %s24, 1
    %s26 = scalar_select %p25, 0, %s24
    %s27 = sadd.s32 1, %s18
    %s28 = scalar_select %p25, %s27, %s18
    %p29 = scmp.ge.s32.totalorder %s28, 2
    %s30 = scalar_select %p29, 0, %s28
    %s31 = ssub.s32 %s18, %s30
    %s32 = ssub.s32 %s19, %s26
    %s33 = sor.u32 %s31, %s32
    %p34 = scmp.eq.s32.totalorder %s33, 0
    %s36 = sadd.s32 %s35, 1
    %s37 = scalar_select %p34, %s35, %s36
    %p40 = pneg %p34
    %p41 = scmp.eq.s32.totalorder %s11, 1
    %p42 = por %p40, %p41
    %p43 = scmp.ne.s32.totalorder %s35, %s38
    %p44 = scmp.eq.s32.totalorder %s11, 0
    %p45 = por %p43, %p44
    %p46 = scmp.ne.s32.totalorder %s35, %s38
    %p47 = scmp.eq.s32.totalorder %s16, 1
    %p48 = por %p46, %p47
    %p49 = scmp.ne.s32.totalorder %s38, %s39
    %p50 = scmp.eq.s32.totalorder %s16, 0
    %p51 = por %p49, %p50
    %p52 = scmp.ne.s32.totalorder %s38, %s39
    %p53 = scmp.eq.s32.totalorder %s17, 1
    %p54 = por %p52, %p53
    %p56 = scmp.ne.s32.totalorder %s39, %s55
    %p57 = scmp.eq.s32.totalorder %s17, 0
    %p58 = por %p56, %p57
    %s60 = sadd.s32 %s59, 1
    %p63 = scmp.eq.s32.totalorder %s11, 1
    %p64 = scmp.ne.s32.totalorder %s59, %s61
    %p65 = scmp.eq.s32.totalorder %s11, 0
    %p66 = por %p64, %p65
    %p67 = scmp.ne.s32.totalorder %s59, %s61
    %p68 = scmp.eq.s32.totalorder %s16, 1
    %p69 = por %p67, %p68
    %p70 = scmp.ne.s32.totalorder %s61, %s62
    %p71 = scmp.eq.s32.totalorder %s16, 0
    %p72 = por %p70, %p71
    %p73 = scmp.ne.s32.totalorder %s61, %s62
    %p74 = scmp.eq.s32.totalorder %s17, 1
    %p75 = por %p73, %p74
    %p77 = scmp.ne.s32.totalorder %s62, %s76
    %p78 = scmp.eq.s32.totalorder %s17, 0
    %p79 = por %p77, %p78
    %s81 = sadd.s32 %s80, 1
    %p84 = scmp.eq.s32.totalorder %s11, 1
    %p85 = scmp.ne.s32.totalorder %s80, %s82
    %p86 = scmp.eq.s32.totalorder %s11, 0
    %p87 = por %p85, %p86
    %p88 = scmp.ne.s32.totalorder %s80, %s82
    %p89 = scmp.eq.s32.totalorder %s16, 1
    %p90 = por %p88, %p89
    %p91 = scmp.ne.s32.totalorder %s82, %s83
    %p92 = scmp.eq.s32.totalorder %s16, 0
    %p93 = por %p91, %p92
    %p94 = scmp.ne.s32.totalorder %s82, %s83
    %p95 = scmp.eq.s32.totalorder %s17, 1
    %p96 = por %p94, %p95
    %p98 = scmp.ne.s32.totalorder %s83, %s97
    %p99 = scmp.eq.s32.totalorder %s17, 0
    %p100 = por %p98, %p99
    %s102 = sadd.s32 %s101, 1
    %p105 = scmp.eq.s32.totalorder %s11, 1
    %p106 = scmp.ne.s32.totalorder %s101, %s103
    %p107 = scmp.eq.s32.totalorder %s11, 0
    %p108 = por %p106, %p107
    %p109 = scmp.ne.s32.totalorder %s101, %s103
    %p110 = scmp.eq.s32.totalorder %s16, 1
    %p111 = por %p109, %p110
    %p112 = scmp.ne.s32.totalorder %s103, %s104
    %p113 = scmp.eq.s32.totalorder %s16, 0
    %p114 = por %p112, %p113
    %p115 = scmp.ne.s32.totalorder %s103, %s104
    %p116 = scmp.eq.s32.totalorder %s17, 1
    %p117 = por %p115, %p116
    %p119 = scmp.ne.s32.totalorder %s104, %s118
    %p120 = scmp.eq.s32.totalorder %s17, 0
    %p121 = por %p119, %p120
    %s123 = sadd.s32 %s122, 1
    %p126 = scmp.eq.s32.totalorder %s11, 1
    %p127 = scmp.ne.s32.totalorder %s122, %s124
    %p128 = scmp.eq.s32.totalorder %s11, 0
    %p129 = por %p127, %p128
    %p130 = scmp.ne.s32.totalorder %s122, %s124
    %p131 = scmp.eq.s32.totalorder %s16, 1
    %p132 = por %p130, %p131
    %p133 = scmp.ne.s32.totalorder %s124, %s125
    %p134 = scmp.eq.s32.totalorder %s16, 0
    %p135 = por %p133, %p134
    %p136 = scmp.ne.s32.totalorder %s124, %s125
    %p137 = scmp.eq.s32.totalorder %s17, 1
    %p138 = por %p136, %p137
    %p140 = scmp.ne.s32.totalorder %s125, %s139
    %p141 = scmp.eq.s32.totalorder %s17, 0
    %p142 = por %p140, %p141
    %s143 = ssub.s32 %s18, %s30
    %s144 = ssub.s32 %s19, %s26
    %s145 = sor.u32 %s143, %s144
    %p146 = scmp.eq.s32.totalorder %s145, 0
    %s148 = sadd.s32 %s147, 1
    %s149 = scalar_select %p146, %s147, %s148
    %p152 = pneg %p146
    %p153 = scmp.eq.s32.totalorder %s11, 1
    %p154 = por %p152, %p153
    %p155 = scmp.ne.s32.totalorder %s147, %s150
    %p156 = scmp.eq.s32.totalorder %s11, 0
    %p157 = por %p155, %p156
    %p158 = scmp.ne.s32.totalorder %s147, %s150
    %p159 = scmp.eq.s32.totalorder %s16, 1
    %p160 = por %p158, %p159
    %p161 = scmp.ne.s32.totalorder %s150, %s151
    %p162 = scmp.eq.s32.totalorder %s16, 0
    %p163 = por %p161, %p162
    %p164 = scmp.ne.s32.totalorder %s150, %s151
    %p165 = scmp.eq.s32.totalorder %s17, 1
    %p166 = por %p164, %p165
    %p168 = scmp.ne.s32.totalorder %s151, %s167
    %p169 = scmp.eq.s32.totalorder %s17, 0
    %p170 = por %p168, %p169
    %p171 = scmp.le.s32.totalorder 1, %s11
    %p172 = scmp.lt.s32.totalorder %s11, 3
    %p173 = pnand %p171, %p172
    %p174 = pneg %p173
    // Predicated region
    $region9: #{wcrw_forward.2} parent=5 // pred_check
      _
    $region10: #{wcrw_forward.2} parent=5 // pred_check_branch
      %176 = sbr.rel (%p173) target = $region12
    $region11: #{wcrw_forward.2} parent=5 // pred_region
      %s177 = ssub.s32 %s11, 1
      // Predicated region
      $region13: #{wcrw_forward.2} parent=11 // pred_check
        %p178 = pneg %p72
      $region14: #{wcrw_forward.2} parent=11 // pred_check_branch
        %180 = sbr.rel (%p178) target = $region16
      $region15: #{wcrw_forward.2} parent=11 // pred_region
        _
      $region16: #{wcrw_forward.2} parent=11 // pred_fallthru
        _
      // Predicated region
      $region17: #{wcrw_forward.2} parent=11 // pred_check
        %p181 = pneg %p93
      $region18: #{wcrw_forward.2} parent=11 // pred_check_branch
        %183 = sbr.rel (%p181) target = $region20
      $region19: #{wcrw_forward.2} parent=11 // pred_region
        _
      $region20: #{wcrw_forward.2} parent=11 // pred_fallthru
        _
      // Predicated region
      $region21: #{wcrw_forward.2} parent=11 // pred_check
        %p184 = pneg %p114
      $region22: #{wcrw_forward.2} parent=11 // pred_check_branch
        %186 = sbr.rel (%p184) target = $region24
      $region23: #{wcrw_forward.2} parent=11 // pred_region
        _
      $region24: #{wcrw_forward.2} parent=11 // pred_fallthru
        _
      // Predicated region
      $region25: #{wcrw_forward.2} parent=11 // pred_check
        %p187 = pneg %p135
      $region26: #{wcrw_forward.2} parent=11 // pred_check_branch
        %189 = sbr.rel (%p187) target = $region28
      $region27: #{wcrw_forward.2} parent=11 // pred_region
        _
      $region28: #{wcrw_forward.2} parent=11 // pred_fallthru
        _
    $region12: #{wcrw_forward.2} parent=5 // pred_fallthru
      _
    %p190 = scmp.lt.s32.totalorder %s11, 2
    // Predicated region
    $region29: #{wcrw_forward.2} parent=5 // pred_check
      %p191 = pneg %p190
    $region30: #{wcrw_forward.2} parent=5 // pred_check_branch
      %193 = sbr.rel (%p191) target = $region32
    $region31: #{wcrw_forward.2} parent=5 // pred_region
      // Predicated region
      $region33: #{wcrw_forward.2} parent=31 // pred_check
        %p194 = pneg %p45
      $region34: #{wcrw_forward.2} parent=31 // pred_check_branch
        %196 = sbr.rel (%p194) target = $region36
      $region35: #{wcrw_forward.2} parent=31 // pred_region
        %s197 = smul.u32 2, %s19
        %p198 = scmp.lt.s32.totalorder %s18, 1
        %s199 = scalar_select %p198, %s18, 1
        %p200 = scmp.lt.s32.totalorder %s197, 1
        %s201 = scalar_select %p200, %s197, 1
        %s202 = smul.addr %s199, 8
        %s203 = sadd.s32 %s201, %s202
        %s204 = smul.addr %s203, 4
        %s205 = scalar_lea.vmem %s0, %s204
        %s206 = smul.u32 2, %s19
      $region36: #{wcrw_forward.2} parent=31 // pred_fallthru
        _
    $region32: #{wcrw_forward.2} parent=5 // pred_fallthru
      _
    %p207 = scmp.le.s32.totalorder 1, %s11
    %p208 = scmp.lt.s32.totalorder %s11, 3
    %p209 = pnand %p207, %p208
    %p210 = pneg %p209
    // Predicated region
    $region37: #{wcrw_forward.2} parent=5 // pred_check
      _
    $region38: #{wcrw_forward.2} parent=5 // pred_check_branch
      %212 = sbr.rel (%p209) target = $region40
    $region39: #{wcrw_forward.2} parent=5 // pred_region
      %s213 = ssub.s32 %s11, 1
      %s214 = smul.u32 2, %s21
      %p215 = scmp.lt.s32.totalorder %s20, 1
      %s216 = scalar_select %p215, %s20, 1
      %p217 = scmp.lt.s32.totalorder %s214, 1
      %s218 = scalar_select %p217, %s214, 1
      %s219 = smul.addr %s216, 8
      %s220 = sadd.s32 %s218, %s219
      %s221 = smul.addr %s220, 4
      %s222 = scalar_lea.vmem %s0, %s221
      %p223 = pneg %p51
      %p224 = pneg %p48
      %p225 = pneg %p72
      %p226 = pneg %p69
      %p227 = pneg %p93
      %p228 = pneg %p90
      %p229 = pneg %p114
      %p230 = pneg %p111
      %p231 = pneg %p135
      %p232 = pneg %p132
      %p233 = pneg %p163
      %p234 = pneg %p160
      %s235 = smul.u32 2, %s21
      %p236 = scmp.lt.s32.totalorder %s20, 1
      %s237 = scalar_select %p236, %s20, 1
      %p238 = scmp.lt.s32.totalorder %s235, 1
      %s239 = scalar_select %p238, %s235, 1
      %s240 = smul.addr %s237, 4
      %s241 = sadd.s32 %s239, %s240
      %s242 = smul.addr %s241, 4
      %s243 = scalar_lea.vmem %s5, %s242
      %s244 = smul.u32 2, %s21
      %p245 = scmp.lt.s32.totalorder %s20, 1
      %s246 = scalar_select %p245, %s20, 1
      %p247 = scmp.lt.s32.totalorder %s244, 1
      %s248 = scalar_select %p247, %s244, 1
      %s249 = smul.addr %s246, 8
      %s250 = sadd.s32 %s248, %s249
      %s251 = smul.addr %s250, 4
      %s252 = scalar_lea.vmem %s0, %s251
      %s253 = smul.u32 2, %s21
      %s254 = smul.u32 2, %s21
      %p255 = scmp.lt.s32.totalorder %s20, 1
      %s256 = scalar_select %p255, %s20, 1
      %p257 = scmp.lt.s32.totalorder %s254, 1
      %s258 = scalar_select %p257, %s254, 1
      %s259 = smul.addr %s256, 4
      %s260 = sadd.s32 %s258, %s259
      %s261 = smul.addr %s260, 4
      %s262 = scalar_lea.vmem %s5, %s261
      %s263 = smul.u32 2, %s21
      %v265 = vld [vmem:[%s1] sm:$0xf]
      %v266 = vld [vmem:[%s1 + $0x4] sm:$0xf]
      %v267 = vld [vmem:[%s1 + $0x8] sm:$0xf]
      %v268 = vld [vmem:[%s1 + $0xc] sm:$0xf]
      %v269 = vld [vmem:[%s1 + $0x10] sm:$0xf]
      %v270 = vld [vmem:[%s1 + $0x14] sm:$0xf]
      %v271 = vld [vmem:[%s1 + $0x18] sm:$0xf]
      %v272 = vld [vmem:[%s1 + $0x1c] sm:$0xf]
      %v273 = vld [vmem:[%s1 + $0x20] sm:$0xf]
      %v274 = vld [vmem:[%s1 + $0x24] sm:$0xf]
      %v275 = vld [vmem:[%s1 + $0x28] sm:$0xf]
      %v276 = vld [vmem:[%s1 + $0x2c] sm:$0xf]
      %v277 = vld [vmem:[%s1 + $0x30] sm:$0xf]
      %v278 = vld [vmem:[%s1 + $0x34] sm:$0xf]
      %v279 = vld [vmem:[%s1 + $0x38] sm:$0xf]
      %v280 = vld [vmem:[%s1 + $0x3c] sm:$0xf]
      %v281 = vld [vmem:[%s1 + $0x40] sm:$0xf]
      %v282 = vld [vmem:[%s1 + $0x44] sm:$0xf]
      %v283 = vld [vmem:[%s1 + $0x48] sm:$0xf]
      %v284 = vld [vmem:[%s1 + $0x4c] sm:$0xf]
      %v285 = vld [vmem:[%s1 + $0x50] sm:$0xf]
      %v286 = vld [vmem:[%s1 + $0x54] sm:$0xf]
      %v287 = vld [vmem:[%s1 + $0x58] sm:$0xf]
      %v288 = vld [vmem:[%s1 + $0x5c] sm:$0xf]
      %v289 = vld [vmem:[%s252] sm:$0xff]
      %v290 = vld [vmem:[%s252 + $0x8] sm:$0xff]
      %v291 = vld [vmem:[%s252 + $0x10] sm:$0xff]
      %v292 = vld [vmem:[%s252 + $0x18] sm:$0xff]
      %v293 = vld [vmem:[%s2] sm:$0xff]
      %v294 = vld [vmem:[%s2 + $0x8] sm:$0xff]
      %v295 = vld [vmem:[%s2 + $0x10] sm:$0xff]
      %v296 = vld [vmem:[%s2 + $0x18] sm:$0xff]
      %v297 = vld [vmem:[%s2 + $0x20] sm:$0xff]
      %v298 = vld [vmem:[%s2 + $0x28] sm:$0xff]
      %v299 = vld [vmem:[%s2 + $0x30] sm:$0xff]
      %v300 = vld [vmem:[%s2 + $0x38] sm:$0xff]
      %v301 = vld [vmem:[%s2 + $0x40] sm:$0xff]
      %v302 = vld [vmem:[%s2 + $0x48] sm:$0xff]
      %v303 = vld [vmem:[%s2 + $0x50] sm:$0xff]
      %v304 = vld [vmem:[%s2 + $0x58] sm:$0xff]
      %v305 = vld [vmem:[%s2 + $0x60] sm:$0xff]
      %v306 = vld [vmem:[%s2 + $0x68] sm:$0xff]
      %v307 = vld [vmem:[%s2 + $0x70] sm:$0xff]
      %v308 = vld [vmem:[%s2 + $0x78] sm:$0xff]
      %v309 = vld [vmem:[%s2 + $0x80] sm:$0xff]
      %v310 = vld [vmem:[%s2 + $0x88] sm:$0xff]
      %v311 = vld [vmem:[%s2 + $0x90] sm:$0xff]
      %v312 = vld [vmem:[%s2 + $0x98] sm:$0xff]
      %v313 = vld [vmem:[%s2 + $0xa0] sm:$0xff]
      %v314 = vld [vmem:[%s2 + $0xa8] sm:$0xff]
      %v315 = vld [vmem:[%s2 + $0xb0] sm:$0xff]
      %v316 = vld [vmem:[%s2 + $0xb8] sm:$0xff]
      %318 = vset.pattern.permute.xlu0 0
      %319 = vperm.xlu0 %318, %v293
      %v320 = vpop.permute.xlu0 %319
      %323 = vset.pattern.permute.xlu0 0
      %324 = vperm.xlu0 %323, %v294
      %v325 = vpop.permute.xlu0 %324
      %328 = vset.pattern.permute.xlu0 0
      %329 = vperm.xlu0 %328, %v295
      %v330 = vpop.permute.xlu0 %329
      %333 = vset.pattern.permute.xlu0 0
      %334 = vperm.xlu0 %333, %v296
      %v335 = vpop.permute.xlu0 %334
      %338 = vset.pattern.permute.xlu0 0
      %339 = vperm.xlu0 %338, %v297
      %v340 = vpop.permute.xlu0 %339
      %343 = vset.pattern.permute.xlu0 0
      %344 = vperm.xlu0 %343, %v298
      %v345 = vpop.permute.xlu0 %344
      %348 = vset.pattern.permute.xlu0 0
      %349 = vperm.xlu0 %348, %v299
      %v350 = vpop.permute.xlu0 %349
      %353 = vset.pattern.permute.xlu0 0
      %354 = vperm.xlu0 %353, %v300
      %v355 = vpop.permute.xlu0 %354
      %358 = vset.pattern.permute.xlu0 0
      %359 = vperm.xlu0 %358, %v301
      %v360 = vpop.permute.xlu0 %359
      %363 = vset.pattern.permute.xlu0 0
      %364 = vperm.xlu0 %363, %v302
      %v365 = vpop.permute.xlu0 %364
      %368 = vset.pattern.permute.xlu0 0
      %369 = vperm.xlu0 %368, %v303
      %v370 = vpop.permute.xlu0 %369
      %373 = vset.pattern.permute.xlu0 0
      %374 = vperm.xlu0 %373, %v304
      %v375 = vpop.permute.xlu0 %374
      %378 = vset.pattern.permute.xlu0 0
      %379 = vperm.xlu0 %378, %v305
      %v380 = vpop.permute.xlu0 %379
      %383 = vset.pattern.permute.xlu0 0
      %384 = vperm.xlu0 %383, %v306
      %v385 = vpop.permute.xlu0 %384
      %388 = vset.pattern.permute.xlu0 0
      %389 = vperm.xlu0 %388, %v307
      %v390 = vpop.permute.xlu0 %389
      %393 = vset.pattern.permute.xlu0 0
      %394 = vperm.xlu0 %393, %v308
      %v395 = vpop.permute.xlu0 %394
      %398 = vset.pattern.permute.xlu0 0
      %399 = vperm.xlu0 %398, %v309
      %v400 = vpop.permute.xlu0 %399
      %403 = vset.pattern.permute.xlu0 0
      %404 = vperm.xlu0 %403, %v310
      %v405 = vpop.permute.xlu0 %404
      %408 = vset.pattern.permute.xlu0 0
      %409 = vperm.xlu0 %408, %v311
      %v410 = vpop.permute.xlu0 %409
      %413 = vset.pattern.permute.xlu0 0
      %414 = vperm.xlu0 %413, %v312
      %v415 = vpop.permute.xlu0 %414
      %418 = vset.pattern.permute.xlu0 0
      %419 = vperm.xlu0 %418, %v313
      %v420 = vpop.permute.xlu0 %419
      %423 = vset.pattern.permute.xlu0 0
      %424 = vperm.xlu0 %423, %v314
      %v425 = vpop.permute.xlu0 %424
      %428 = vset.pattern.permute.xlu0 0
      %429 = vperm.xlu0 %428, %v315
      %v430 = vpop.permute.xlu0 %429
      %433 = vset.pattern.permute.xlu0 0
      %434 = vperm.xlu0 %433, %v316
      %v435 = vpop.permute.xlu0 %434
      %v461 = vunpack.c.l.b16 %v265
      %v462 = vunpack.c.l.b16 %v266
      %v463 = vunpack.c.l.b16 %v267
      %v464 = vunpack.c.l.b16 %v268
      %v465 = vunpack.c.l.b16 %v269
      %v466 = vunpack.c.l.b16 %v270
      %v467 = vunpack.c.l.b16 %v271
      %v468 = vunpack.c.l.b16 %v272
      %v469 = vunpack.c.l.b16 %v273
      %v470 = vunpack.c.l.b16 %v274
      %v471 = vunpack.c.l.b16 %v275
      %v472 = vunpack.c.l.b16 %v276
      %v473 = vunpack.c.l.b16 %v277
      %v474 = vunpack.c.l.b16 %v278
      %v475 = vunpack.c.l.b16 %v279
      %v476 = vunpack.c.l.b16 %v280
      %v477 = vunpack.c.l.b16 %v281
      %v478 = vunpack.c.l.b16 %v282
      %v479 = vunpack.c.l.b16 %v283
      %v480 = vunpack.c.l.b16 %v284
      %v481 = vunpack.c.l.b16 %v285
      %v482 = vunpack.c.l.b16 %v286
      %v483 = vunpack.c.l.b16 %v287
      %v484 = vunpack.c.l.b16 %v288
      %v485 = vpack.c.b16 %v462, %v461
      %v486 = vpack.c.b16 %v464, %v463
      %v487 = vpack.c.b16 %v466, %v465
      %v488 = vpack.c.b16 %v468, %v467
      %v489 = vpack.c.b16 %v470, %v469
      %v490 = vpack.c.b16 %v472, %v471
      %v491 = vpack.c.b16 %v474, %v473
      %v492 = vpack.c.b16 %v476, %v475
      %v493 = vpack.c.b16 %v478, %v477
      %v494 = vpack.c.b16 %v480, %v479
      %v495 = vpack.c.b16 %v482, %v481
      %v496 = vpack.c.b16 %v484, %v483
      %v501 = vunpack.c.l.b16 %v289
      %v502 = vunpack.c.h.b16 %v289
      %v503 = vunpack.c.l.b16 %v290
      %v504 = vunpack.c.h.b16 %v290
      %v505 = vunpack.c.l.b16 %v291
      %v506 = vunpack.c.h.b16 %v291
      %v507 = vunpack.c.l.b16 %v292
      %v508 = vunpack.c.h.b16 %v292
      %v509 = vpack.c.b16 %v503, %v501
      %v510 = vpack.c.b16 %v504, %v502
      %v511 = vpack.c.b16 %v507, %v505
      %v512 = vpack.c.b16 %v508, %v506
      %vm517 = vcmask 261120
      %v519 = vsel %vm517, %v485, 0
      %v522 = vsel %vm517, %v486, 0
      %v525 = vsel %vm517, %v487, 0
      %v528 = vsel %vm517, %v488, 0
      %v531 = vsel %vm517, %v489, 0
      %v534 = vsel %vm517, %v490, 0
      %v537 = vsel %vm517, %v491, 0
      %v540 = vsel %vm517, %v492, 0
      %v543 = vsel %vm517, %v493, 0
      %v546 = vsel %vm517, %v494, 0
      %v549 = vsel %vm517, %v495, 0
      %v552 = vsel %vm517, %v496, 0
      %554 = vmatprep.subr.bf16.mxu0 %v510
      %555 = vmatpush1.bf16.msra.mxu0 %v509
      %556 = vmatprep.subr.bf16.mxu0 %v512
      %557 = vmatpush1.bf16.msra.mxu0 %v511
      %558 = vmatprep.subr.bf16.mxu0 0
      %559 = vmatpush1.bf16.msra.mxu0 0
      %560 = vmatprep.subr.bf16.mxu0 0
      %561 = vmatpush1.bf16.msra.mxu0 0
      %562 = vmatprep.subr.bf16.mxu0 0
      %563 = vmatpush1.bf16.msra.mxu0 0
      %564 = vmatprep.subr.bf16.mxu0 0
      %565 = vmatpush1.bf16.msra.mxu0 0
      %566 = vmatprep.subr.bf16.mxu0 0
      %567 = vmatpush1.bf16.msra.mxu0 0
      %568 = vmatprep.subr.bf16.mxu0 0
      %569 = vmatpush1.bf16.msra.mxu0 0
      %570 = vmatprep.subr.bf16.mxu0 0
      %571 = vmatpush1.bf16.msra.mxu0 0
      %572 = vmatprep.subr.bf16.mxu0 0
      %573 = vmatpush1.bf16.msra.mxu0 0
      %574 = vmatprep.subr.bf16.mxu0 0
      %575 = vmatpush1.bf16.msra.mxu0 0
      %576 = vmatprep.subr.bf16.mxu0 0
      %577 = vmatpush1.bf16.msra.mxu0 0
      %578 = vmatprep.subr.bf16.mxu0 0
      %579 = vmatpush1.bf16.msra.mxu0 0
      %580 = vmatprep.subr.bf16.mxu0 0
      %581 = vmatpush1.bf16.msra.mxu0 0
      %582 = vmatprep.subr.bf16.mxu0 0
      %583 = vmatpush1.bf16.msra.mxu0 0
      %584 = vmatprep.subr.bf16.mxu0 0
      %585 = vmatpush1.bf16.msra.mxu0 0
      %586 = vmatprep.mubr.bf16.mxu0 0
      %587 = vmatmul.mubr.bf16.gmra.mrb[0].mxu0 %v519
      %v588 = vpop.f32.mrb[0].mxu0
      %v589 = vadd.f32 %v320, %v588
      %v590 = vpop.f32.mrb[0].mxu0
      %v591 = vadd.f32 %v320, %v590
      %v592 = vpop.f32.mrb[0].mxu0
      %v593 = vadd.f32 %v325, %v592
      %v594 = vpop.f32.mrb[0].mxu0
      %v595 = vadd.f32 %v325, %v594
      %596 = vmatprep.mubr.bf16.mxu0 0
      %597 = vmatmul.mubr.bf16.gmra.mrb[0].mxu0 %v522
      %v598 = vpop.f32.mrb[0].mxu0
      %v599 = vadd.f32 %v330, %v598
      %v600 = vpop.f32.mrb[0].mxu0
      %v601 = vadd.f32 %v330, %v600
      %v602 = vpop.f32.mrb[0].mxu0
      %v603 = vadd.f32 %v335, %v602
      %v604 = vpop.f32.mrb[0].mxu0
      %v605 = vadd.f32 %v335, %v604
      %606 = vmatprep.mubr.bf16.mxu0 0
      %607 = vmatmul.mubr.bf16.gmra.mrb[0].mxu0 %v525
      %v608 = vpop.f32.mrb[0].mxu0
      %v609 = vadd.f32 %v340, %v608
      %v610 = vpop.f32.mrb[0].mxu0
      %v611 = vadd.f32 %v340, %v610
      %v612 = vpop.f32.mrb[0].mxu0
      %v613 = vadd.f32 %v345, %v612
      %v614 = vpop.f32.mrb[0].mxu0
      %v615 = vadd.f32 %v345, %v614
      %616 = vmatprep.mubr.bf16.mxu0 0
      %617 = vmatmul.mubr.bf16.gmra.mrb[0].mxu0 %v528
      %v618 = vpop.f32.mrb[0].mxu0
      %v619 = vadd.f32 %v350, %v618
      %v620 = vpop.f32.mrb[0].mxu0
      %v621 = vadd.f32 %v350, %v620
      %v622 = vpop.f32.mrb[0].mxu0
      %v623 = vadd.f32 %v355, %v622
      %v624 = vpop.f32.mrb[0].mxu0
      %v625 = vadd.f32 %v355, %v624
      %626 = vmatprep.mubr.bf16.mxu0 0
      %627 = vmatmul.mubr.bf16.gmra.mrb[0].mxu0 %v531
      %v628 = vpop.f32.mrb[0].mxu0
      %v629 = vadd.f32 %v360, %v628
      %v630 = vpop.f32.mrb[0].mxu0
      %v631 = vadd.f32 %v360, %v630
      %v632 = vpop.f32.mrb[0].mxu0
      %v633 = vadd.f32 %v365, %v632
      %v634 = vpop.f32.mrb[0].mxu0
      %v635 = vadd.f32 %v365, %v634
      %636 = vmatprep.mubr.bf16.mxu0 0
      %637 = vmatmul.mubr.bf16.gmra.mrb[0].mxu0 %v534
      %v638 = vpop.f32.mrb[0].mxu0
      %v639 = vadd.f32 %v370, %v638
      %v640 = vpop.f32.mrb[0].mxu0
      %v641 = vadd.f32 %v370, %v640
      %v642 = vpop.f32.mrb[0].mxu0
      %v643 = vadd.f32 %v375, %v642
      %v644 = vpop.f32.mrb[0].mxu0
      %v645 = vadd.f32 %v375, %v644
      %646 = vmatprep.mubr.bf16.mxu0 0
      %647 = vmatmul.mubr.bf16.gmra.mrb[0].mxu0 %v537
      %v648 = vpop.f32.mrb[0].mxu0
      %v649 = vadd.f32 %v380, %v648
      %v650 = vpop.f32.mrb[0].mxu0
      %v651 = vadd.f32 %v380, %v650
      %v652 = vpop.f32.mrb[0].mxu0
      %v653 = vadd.f32 %v385, %v652
      %v654 = vpop.f32.mrb[0].mxu0
      %v655 = vadd.f32 %v385, %v654
      %656 = vmatprep.mubr.bf16.mxu0 0
      %657 = vmatmul.mubr.bf16.gmra.mrb[0].mxu0 %v540
      %v658 = vpop.f32.mrb[0].mxu0
      %v659 = vadd.f32 %v390, %v658
      %v660 = vpop.f32.mrb[0].mxu0
      %v661 = vadd.f32 %v390, %v660
      %v662 = vpop.f32.mrb[0].mxu0
      %v663 = vadd.f32 %v395, %v662
      %v664 = vpop.f32.mrb[0].mxu0
      %v665 = vadd.f32 %v395, %v664
      %666 = vmatprep.mubr.bf16.mxu0 0
      %667 = vmatmul.mubr.bf16.gmra.mrb[0].mxu0 %v543
      %v668 = vpop.f32.mrb[0].mxu0
      %v669 = vadd.f32 %v400, %v668
      %v670 = vpop.f32.mrb[0].mxu0
      %v671 = vadd.f32 %v400, %v670
      %v672 = vpop.f32.mrb[0].mxu0
      %v673 = vadd.f32 %v405, %v672
      %v674 = vpop.f32.mrb[0].mxu0
      %v675 = vadd.f32 %v405, %v674
      %676 = vmatprep.mubr.bf16.mxu0 0
      %677 = vmatmul.mubr.bf16.gmra.mrb[0].mxu0 %v546
      %v678 = vpop.f32.mrb[0].mxu0
      %v679 = vadd.f32 %v410, %v678
      %v680 = vpop.f32.mrb[0].mxu0
      %v681 = vadd.f32 %v410, %v680
      %v682 = vpop.f32.mrb[0].mxu0
      %v683 = vadd.f32 %v415, %v682
      %v684 = vpop.f32.mrb[0].mxu0
      %v685 = vadd.f32 %v415, %v684
      %686 = vmatprep.mubr.bf16.mxu0 0
      %687 = vmatmul.mubr.bf16.gmra.mrb[0].mxu0 %v549
      %v688 = vpop.f32.mrb[0].mxu0
      %v689 = vadd.f32 %v420, %v688
      %v690 = vpop.f32.mrb[0].mxu0
      %v691 = vadd.f32 %v420, %v690
      %v692 = vpop.f32.mrb[0].mxu0
      %v693 = vadd.f32 %v425, %v692
      %v694 = vpop.f32.mrb[0].mxu0
      %v695 = vadd.f32 %v425, %v694
      %696 = vmatprep.mubr.bf16.mxu0 0
      %697 = vmatmul.mubr.bf16.gmra.mrb[0].mxu0 %v552
      %v698 = vpop.f32.mrb[0].mxu0
      %v699 = vadd.f32 %v430, %v698
      %v700 = vpop.f32.mrb[0].mxu0
      %v701 = vadd.f32 %v430, %v700
      %v702 = vpop.f32.mrb[0].mxu0
      %v703 = vadd.f32 %v435, %v702
      %v704 = vpop.f32.mrb[0].mxu0
      %v705 = vadd.f32 %v435, %v704
      %706 = vdwg.mxu0
      %v707 = vmax.f32 %v589, 0.0
      %v708 = vmax.f32 %v591, 0.0
      %v709 = vmax.f32 %v593, 0.0
      %v710 = vmax.f32 %v595, 0.0
      %v711 = vmax.f32 %v599, 0.0
      %v712 = vmax.f32 %v601, 0.0
      %v713 = vmax.f32 %v603, 0.0
      %v714 = vmax.f32 %v605, 0.0
      %v715 = vmax.f32 %v609, 0.0
      %v716 = vmax.f32 %v611, 0.0
      %v717 = vmax.f32 %v613, 0.0
      %v718 = vmax.f32 %v615, 0.0
      %v719 = vmax.f32 %v619, 0.0
      %v720 = vmax.f32 %v621, 0.0
      %v721 = vmax.f32 %v623, 0.0
      %v722 = vmax.f32 %v625, 0.0
      %v723 = vmax.f32 %v629, 0.0
      %v724 = vmax.f32 %v631, 0.0
      %v725 = vmax.f32 %v633, 0.0
      %v726 = vmax.f32 %v635, 0.0
      %v727 = vmax.f32 %v639, 0.0
      %v728 = vmax.f32 %v641, 0.0
      %v729 = vmax.f32 %v643, 0.0
      %v730 = vmax.f32 %v645, 0.0
      %v731 = vmax.f32 %v649, 0.0
      %v732 = vmax.f32 %v651, 0.0
      %v733 = vmax.f32 %v653, 0.0
      %v734 = vmax.f32 %v655, 0.0
      %v735 = vmax.f32 %v659, 0.0
      %v736 = vmax.f32 %v661, 0.0
      %v737 = vmax.f32 %v663, 0.0
      %v738 = vmax.f32 %v665, 0.0
      %v739 = vmax.f32 %v669, 0.0
      %v740 = vmax.f32 %v671, 0.0
      %v741 = vmax.f32 %v673, 0.0
      %v742 = vmax.f32 %v675, 0.0
      %v743 = vmax.f32 %v679, 0.0
      %v744 = vmax.f32 %v681, 0.0
      %v745 = vmax.f32 %v683, 0.0
      %v746 = vmax.f32 %v685, 0.0
      %v747 = vmax.f32 %v689, 0.0
      %v748 = vmax.f32 %v691, 0.0
      %v749 = vmax.f32 %v693, 0.0
      %v750 = vmax.f32 %v695, 0.0
      %v751 = vmax.f32 %v699, 0.0
      %v752 = vmax.f32 %v701, 0.0
      %v753 = vmax.f32 %v703, 0.0
      %v754 = vmax.f32 %v705, 0.0
      %v755 = vpack.c.bf16 %v709, %v707
      %v756 = vpack.c.bf16 %v710, %v708
      %v757 = vpack.c.bf16 %v713, %v711
      %v758 = vpack.c.bf16 %v714, %v712
      %v759 = vpack.c.bf16 %v717, %v715
      %v760 = vpack.c.bf16 %v718, %v716
      %v761 = vpack.c.bf16 %v721, %v719
      %v762 = vpack.c.bf16 %v722, %v720
      %v763 = vpack.c.bf16 %v725, %v723
      %v764 = vpack.c.bf16 %v726, %v724
      %v765 = vpack.c.bf16 %v729, %v727
      %v766 = vpack.c.bf16 %v730, %v728
      %v767 = vpack.c.bf16 %v733, %v731
      %v768 = vpack.c.bf16 %v734, %v732
      %v769 = vpack.c.bf16 %v737, %v735
      %v770 = vpack.c.bf16 %v738, %v736
      %v771 = vpack.c.bf16 %v741, %v739
      %v772 = vpack.c.bf16 %v742, %v740
      %v773 = vpack.c.bf16 %v745, %v743
      %v774 = vpack.c.bf16 %v746, %v744
      %v775 = vpack.c.bf16 %v749, %v747
      %v776 = vpack.c.bf16 %v750, %v748
      %v777 = vpack.c.bf16 %v753, %v751
      %v778 = vpack.c.bf16 %v754, %v752
      %779 = vst [vmem:[#allocation2] sm:$0xff] %v755
      %780 = vst [vmem:[#allocation2 + $0x8] sm:$0xff] %v756
      %781 = vst [vmem:[#allocation2 + $0x10] sm:$0xff] %v757
      %782 = vst [vmem:[#allocation2 + $0x18] sm:$0xff] %v758
      %783 = vst [vmem:[#allocation2 + $0x20] sm:$0xff] %v759
      %784 = vst [vmem:[#allocation2 + $0x28] sm:$0xff] %v760
      %785 = vst [vmem:[#allocation2 + $0x30] sm:$0xff] %v761
      %786 = vst [vmem:[#allocation2 + $0x38] sm:$0xff] %v762
      %787 = vst [vmem:[#allocation2 + $0x40] sm:$0xff] %v763
      %788 = vst [vmem:[#allocation2 + $0x48] sm:$0xff] %v764
      %789 = vst [vmem:[#allocation2 + $0x50] sm:$0xff] %v765
      %790 = vst [vmem:[#allocation2 + $0x58] sm:$0xff] %v766
      %791 = vst [vmem:[#allocation2 + $0x60] sm:$0xff] %v767
      %792 = vst [vmem:[#allocation2 + $0x68] sm:$0xff] %v768
      %793 = vst [vmem:[#allocation2 + $0x70] sm:$0xff] %v769
      %794 = vst [vmem:[#allocation2 + $0x78] sm:$0xff] %v770
      %795 = vst [vmem:[#allocation2 + $0x80] sm:$0xff] %v771
      %796 = vst [vmem:[#allocation2 + $0x88] sm:$0xff] %v772
      %797 = vst [vmem:[#allocation2 + $0x90] sm:$0xff] %v773
      %798 = vst [vmem:[#allocation2 + $0x98] sm:$0xff] %v774
      %799 = vst [vmem:[#allocation2 + $0xa0] sm:$0xff] %v775
      %800 = vst [vmem:[#allocation2 + $0xa8] sm:$0xff] %v776
      %801 = vst [vmem:[#allocation2 + $0xb0] sm:$0xff] %v777
      %802 = vst [vmem:[#allocation2 + $0xb8] sm:$0xff] %v778
      %v803 = vld [vmem:[%s3] sm:$0xff]
      %v804 = vld [vmem:[%s3 + $0x8] sm:$0xff]
      %v805 = vld [vmem:[#allocation2] sm:$0xff]
      %v806 = vld [vmem:[#allocation2 + $0x8] sm:$0xff]
      %v807 = vld [vmem:[#allocation2 + $0x10] sm:$0xff]
      %v808 = vld [vmem:[#allocation2 + $0x18] sm:$0xff]
      %v809 = vld [vmem:[#allocation2 + $0x20] sm:$0xff]
      %v810 = vld [vmem:[#allocation2 + $0x28] sm:$0xff]
      %v811 = vld [vmem:[#allocation2 + $0x30] sm:$0xff]
      %v812 = vld [vmem:[#allocation2 + $0x38] sm:$0xff]
      %v813 = vld [vmem:[#allocation2 + $0x40] sm:$0xff]
      %v814 = vld [vmem:[#allocation2 + $0x48] sm:$0xff]
      %v815 = vld [vmem:[#allocation2 + $0x50] sm:$0xff]
      %v816 = vld [vmem:[#allocation2 + $0x58] sm:$0xff]
      %v817 = vld [vmem:[#allocation2 + $0x60] sm:$0xff]
      %v818 = vld [vmem:[#allocation2 + $0x68] sm:$0xff]
      %v819 = vld [vmem:[#allocation2 + $0x70] sm:$0xff]
      %v820 = vld [vmem:[#allocation2 + $0x78] sm:$0xff]
      %v821 = vld [vmem:[#allocation2 + $0x80] sm:$0xff]
      %v822 = vld [vmem:[#allocation2 + $0x88] sm:$0xff]
      %v823 = vld [vmem:[#allocation2 + $0x90] sm:$0xff]
      %v824 = vld [vmem:[#allocation2 + $0x98] sm:$0xff]
      %v825 = vld [vmem:[#allocation2 + $0xa0] sm:$0xff]
      %v826 = vld [vmem:[#allocation2 + $0xa8] sm:$0xff]
      %v827 = vld [vmem:[#allocation2 + $0xb0] sm:$0xff]
      %v828 = vld [vmem:[#allocation2 + $0xb8] sm:$0xff]
      %v829 = vld [vmem:[%s4] sm:$0xff]
      %v830 = vld [vmem:[%s4 + $0x8] sm:$0xff]
      %832 = vset.pattern.permute.xlu0 0
      %833 = vperm.xlu0 %832, %v829
      %v834 = vpop.permute.xlu0 %833
      %837 = vset.pattern.permute.xlu0 0
      %838 = vperm.xlu0 %837, %v830
      %v839 = vpop.permute.xlu0 %838
      %v843 = vunpack.c.l.b16 %v803
      %v844 = vunpack.c.h.b16 %v803
      %v845 = vunpack.c.l.b16 %v804
      %v846 = vunpack.c.h.b16 %v804
      %v847 = vpack.c.b16 %v845, %v843
      %v848 = vpack.c.b16 %v846, %v844
      %vm850 = vcmask 523264
      %v852 = vsel %vm850, %v848, 0
      %854 = vmatprep.subr.bf16.mxu0 %v806
      %855 = vmatpush1.bf16.msra.mxu0 %v805
      %856 = vmatprep.subr.bf16.mxu0 %v808
      %857 = vmatpush1.bf16.msra.mxu0 %v807
      %858 = vmatprep.subr.bf16.mxu0 %v810
      %859 = vmatpush1.bf16.msra.mxu0 %v809
      %860 = vmatprep.subr.bf16.mxu0 %v812
      %861 = vmatpush1.bf16.msra.mxu0 %v811
      %862 = vmatprep.subr.bf16.mxu0 %v814
      %863 = vmatpush1.bf16.msra.mxu0 %v813
      %864 = vmatprep.subr.bf16.mxu0 %v816
      %865 = vmatpush1.bf16.msra.mxu0 %v815
      %866 = vmatprep.subr.bf16.mxu0 %v818
      %867 = vmatpush1.bf16.msra.mxu0 %v817
      %868 = vmatprep.subr.bf16.mxu0 %v820
      %869 = vmatpush1.bf16.msra.mxu0 %v819
      %870 = vmatprep.subr.bf16.mxu0 %v822
      %871 = vmatpush1.bf16.msra.mxu0 %v821
      %872 = vmatprep.subr.bf16.mxu0 %v824
      %873 = vmatpush1.bf16.msra.mxu0 %v823
      %874 = vmatprep.subr.bf16.mxu0 %v826
      %875 = vmatpush1.bf16.msra.mxu0 %v825
      %876 = vmatprep.subr.bf16.mxu0 %v828
      %877 = vmatpush1.bf16.msra.mxu0 %v827
      %878 = vmatprep.subr.bf16.mxu0 0
      %879 = vmatpush1.bf16.msra.mxu0 0
      %880 = vmatprep.subr.bf16.mxu0 0
      %881 = vmatpush1.bf16.msra.mxu0 0
      %882 = vmatprep.subr.bf16.mxu0 0
      %883 = vmatpush1.bf16.msra.mxu0 0
      %884 = vmatprep.subr.bf16.mxu0 0
      %885 = vmatpush1.bf16.msra.mxu0 0
      %886 = vmatprep.mubr.bf16.mxu0 %v852
      %887 = vmatmul.mubr.bf16.gmra.mrb[0].mxu0 %v847
      %v888 = vpop.f32.mrb[0].mxu0
      %v889 = vadd.f32 %v834, %v888
      %v890 = vpop.f32.mrb[0].mxu0
      %v891 = vadd.f32 %v834, %v890
      %v892 = vpop.f32.mrb[0].mxu0
      %v893 = vadd.f32 %v839, %v892
      %v894 = vpop.f32.mrb[0].mxu0
      %v895 = vadd.f32 %v839, %v894
      %896 = vdwg.mxu0
      %v897 = vpack.c.bf16 %v893, %v889
      %v898 = vpack.c.bf16 %v895, %v891
      %v901 = vunpack.c.l.b16 %v897
      %v902 = vunpack.c.l.b16 %v898
      %v903 = vunpack.c.h.b16 %v897
      %v904 = vunpack.c.h.b16 %v898
      %v905 = vpack.c.b16 %v902, %v901
      %v906 = vpack.c.b16 %v904, %v903
      %909 = vst [vmem:[%s262] sm:$0xff] %v905
      %910 = vst [vmem:[%s262 + $0x8] sm:$0xff] %v906
      %s911 = smul.u32 2, %s21
      %p912 = scmp.lt.s32.totalorder %s20, 1
      %s913 = scalar_select %p912, %s20, 1
      %p914 = scmp.lt.s32.totalorder %s911, 1
      %s915 = scalar_select %p914, %s911, 1
      %s916 = smul.addr %s913, 4
      %s917 = sadd.s32 %s915, %s916
      %s918 = smul.addr %s917, 4
      %s919 = scalar_lea.vmem %s5, %s918
      // Predicated region
      $region41: #{wcrw_forward.2} parent=39 // pred_check
        %p920 = pneg %p160
      $region42: #{wcrw_forward.2} parent=39 // pred_check_branch
        %922 = sbr.rel (%p920) target = $region44
      $region43: #{wcrw_forward.2} parent=39 // pred_region
        %s923 = smul.u32 2, %s21
      $region44: #{wcrw_forward.2} parent=39 // pred_fallthru
        _
    $region40: #{wcrw_forward.2} parent=5 // pred_fallthru
      _
    %p924 = scmp.le.s32.totalorder 2, %s11
    // Predicated region
    $region45: #{wcrw_forward.2} parent=5 // pred_check
      %p925 = pneg %p924
    $region46: #{wcrw_forward.2} parent=5 // pred_check_branch
      %927 = sbr.rel (%p925) target = $region48
    $region47: #{wcrw_forward.2} parent=5 // pred_region
      %s928 = ssub.s32 %s11, 2
      // Predicated region
      $region49: #{wcrw_forward.2} parent=47 // pred_check
        %p929 = pneg %p166
      $region50: #{wcrw_forward.2} parent=47 // pred_check_branch
        %931 = sbr.rel (%p929) target = $region52
      $region51: #{wcrw_forward.2} parent=47 // pred_region
        %s932 = smul.u32 2, %s23
        %p933 = scmp.lt.s32.totalorder %s22, 1
        %s934 = scalar_select %p933, %s22, 1
        %p935 = scmp.lt.s32.totalorder %s932, 1
        %s936 = scalar_select %p935, %s932, 1
        %s937 = smul.addr %s934, 4
        %s938 = sadd.s32 %s936, %s937
        %s939 = smul.addr %s938, 4
        %s940 = scalar_lea.vmem %s5, %s939
      $region52: #{wcrw_forward.2} parent=47 // pred_fallthru
        _
    $region48: #{wcrw_forward.2} parent=5 // pred_fallthru
      _
  $region6: #{wcrw_forward.2} parent=0 // loop_footer
    %s15 = sadd.s32 1, %s11
  $region7: #{wcrw_forward.2} parent=0 // loop_footer_branch
    %10 = sbr.rel target = $region3
  $region8: #{wcrw_forward.2} parent=0 // loop_exit
    _

// kernel: wcrw_forward.3
$region0: #{wcrw_forward.3}
  #allocation0 [shape = 'u32[]', space=smem, size = 0x4, offset = 0x4, fixed_abs, tag = 'smem constant byte address 0x4 - core index']
  #allocation1 [shape = 'u32[144,128]{1,0:T(1,128)}', space=vmem, size = 0x12000, scoped, tag = 'internal scratch']
  #allocation2 [shape = 'f32[1,1]{1,0:T(1,128)S(1)}', space=vmem, size = 0x200, scoped, tag = 'scoped memory for wcrw_forward.3']
  %s0 = inlined_call_operand.vmem [shape: bf16[2,144,256], index: 0, kind: input, shape index: {}]
  %s1 = inlined_call_operand.vmem [shape: bf16[16,144], index: 1, kind: input, shape index: {}]
  %s2 = inlined_call_operand.vmem [shape: f32[16,1], index: 2, kind: input, shape index: {}]
  %s3 = inlined_call_operand.vmem [shape: bf16[2,32,256], index: 3, kind: input, shape index: {}]
  %s4 = inlined_call_operand.vmem [shape: bf16[16,32], index: 4, kind: input, shape index: {}]
  %s5 = inlined_call_operand.vmem [shape: f32[16,1], index: 5, kind: input, shape index: {}]
  %s6 = inlined_call_operand.<no memory space> [shape: f32[1,1], index: 6, kind: input, shape index: {}]
  %s7 = inlined_call_operand.vmem [shape: f32[2,16,256], index: 7, kind: output, shape index: {}]
  %s8 = sld [smem:[#allocation0]]
  $region61: #{wcrw_forward.3} parent=0
    _
  %s10 = ssub.s32 1, %s8
  %s11 = scalar_select 0, %s10, %s8
  %v12 = vstv %s6
  %13 = vst [vmem:[#allocation2] sm:$0x1] %v12
  loop: start=0, step=1, limit=4
  $region2: #{wcrw_forward.3} parent=0 // loop_pre_header
    _
  $region3: #{wcrw_forward.3} parent=0 // loop_header
    %s15 = sphi 0, %s19
    %p16 = scmp.ge.s32.totalorder %s15, 4
    %s22 = sphi 0, %s34
    %s23 = sphi 0, %s30
    %s24 = sphi 0, %s22
    %s25 = sphi 0, %s23
    %s26 = sphi 0, %s24
    %s27 = sphi 0, %s25
    %s39 = sphi 0, %s41
    %s42 = sphi 0, %s39
    %s43 = sphi 0, %s42
    %s59 = sphi 0, %s43
    %s63 = sphi 0, %s63
    %s65 = sphi 0, %s63
    %s66 = sphi 0, %s65
    %s80 = sphi 0, %s66
    %s84 = sphi 0, %s84
    %s86 = sphi 0, %s84
    %s87 = sphi 0, %s86
    %s101 = sphi 0, %s87
    %s109 = sphi 0, %s111
    %s112 = sphi 0, %s109
    %s113 = sphi 0, %s112
    %s129 = sphi 0, %s113
    %s133 = sphi 0, %s133
    %s135 = sphi 0, %s133
    %s136 = sphi 0, %s135
    %s150 = sphi 0, %s136
    %s154 = sphi 0, %s154
    %s156 = sphi 0, %s154
    %s157 = sphi 0, %s156
    %s171 = sphi 0, %s157
    %s175 = sphi 0, %s175
    %s177 = sphi 0, %s175
    %s178 = sphi 0, %s177
    %s192 = sphi 0, %s178
    %s200 = sphi 0, %s202
    %s203 = sphi 0, %s200
    %s204 = sphi 0, %s203
    %s220 = sphi 0, %s204
  $region4: #{wcrw_forward.3} parent=0 // loop_header_branch
    %18 = sbr.rel (%p16) target = $region8
  $region5: #{wcrw_forward.3} parent=0 // loop_body
    %s20 = ssub.s32 %s15, 1
    %s21 = ssub.s32 %s15, 2
    %s28 = sadd.s32 1, %s23
    %p29 = scmp.ge.s32.totalorder %s28, 1
    %s30 = scalar_select %p29, 0, %s28
    %s31 = sadd.s32 1, %s22
    %s32 = scalar_select %p29, %s31, %s22
    %p33 = scmp.ge.s32.totalorder %s32, 2
    %s34 = scalar_select %p33, 0, %s32
    %s35 = ssub.s32 %s22, %s34
    %s36 = ssub.s32 %s23, %s30
    %s37 = sor.u32 %s35, %s36
    %p38 = scmp.eq.s32.totalorder %s37, 0
    %s40 = sadd.s32 %s39, 1
    %s41 = scalar_select %p38, %s39, %s40
    %p44 = pneg %p38
    %p45 = scmp.eq.s32.totalorder %s15, 1
    %p46 = por %p44, %p45
    %p47 = scmp.ne.s32.totalorder %s39, %s42
    %p48 = scmp.eq.s32.totalorder %s15, 0
    %p49 = por %p47, %p48
    %p50 = scmp.ne.s32.totalorder %s39, %s42
    %p51 = scmp.eq.s32.totalorder %s20, 1
    %p52 = por %p50, %p51
    %p53 = scmp.ne.s32.totalorder %s42, %s43
    %p54 = scmp.eq.s32.totalorder %s20, 0
    %p55 = por %p53, %p54
    %p56 = scmp.ne.s32.totalorder %s42, %s43
    %p57 = scmp.eq.s32.totalorder %s21, 1
    %p58 = por %p56, %p57
    %p60 = scmp.ne.s32.totalorder %s43, %s59
    %p61 = scmp.eq.s32.totalorder %s21, 0
    %p62 = por %p60, %p61
    %s64 = sadd.s32 %s63, 1
    %p67 = scmp.eq.s32.totalorder %s15, 1
    %p68 = scmp.ne.s32.totalorder %s63, %s65
    %p69 = scmp.eq.s32.totalorder %s15, 0
    %p70 = por %p68, %p69
    %p71 = scmp.ne.s32.totalorder %s63, %s65
    %p72 = scmp.eq.s32.totalorder %s20, 1
    %p73 = por %p71, %p72
    %p74 = scmp.ne.s32.totalorder %s65, %s66
    %p75 = scmp.eq.s32.totalorder %s20, 0
    %p76 = por %p74, %p75
    %p77 = scmp.ne.s32.totalorder %s65, %s66
    %p78 = scmp.eq.s32.totalorder %s21, 1
    %p79 = por %p77, %p78
    %p81 = scmp.ne.s32.totalorder %s66, %s80
    %p82 = scmp.eq.s32.totalorder %s21, 0
    %p83 = por %p81, %p82
    %s85 = sadd.s32 %s84, 1
    %p88 = scmp.eq.s32.totalorder %s15, 1
    %p89 = scmp.ne.s32.totalorder %s84, %s86
    %p90 = scmp.eq.s32.totalorder %s15, 0
    %p91 = por %p89, %p90
    %p92 = scmp.ne.s32.totalorder %s84, %s86
    %p93 = scmp.eq.s32.totalorder %s20, 1
    %p94 = por %p92, %p93
    %p95 = scmp.ne.s32.totalorder %s86, %s87
    %p96 = scmp.eq.s32.totalorder %s20, 0
    %p97 = por %p95, %p96
    %p98 = scmp.ne.s32.totalorder %s86, %s87
    %p99 = scmp.eq.s32.totalorder %s21, 1
    %p100 = por %p98, %p99
    %p102 = scmp.ne.s32.totalorder %s87, %s101
    %p103 = scmp.eq.s32.totalorder %s21, 0
    %p104 = por %p102, %p103
    %s105 = ssub.s32 %s22, %s34
    %s106 = ssub.s32 %s23, %s30
    %s107 = sor.u32 %s105, %s106
    %p108 = scmp.eq.s32.totalorder %s107, 0
    %s110 = sadd.s32 %s109, 1
    %s111 = scalar_select %p108, %s109, %s110
    %p114 = pneg %p108
    %p115 = scmp.eq.s32.totalorder %s15, 1
    %p116 = por %p114, %p115
    %p117 = scmp.ne.s32.totalorder %s109, %s112
    %p118 = scmp.eq.s32.totalorder %s15, 0
    %p119 = por %p117, %p118
    %p120 = scmp.ne.s32.totalorder %s109, %s112
    %p121 = scmp.eq.s32.totalorder %s20, 1
    %p122 = por %p120, %p121
    %p123 = scmp.ne.s32.totalorder %s112, %s113
    %p124 = scmp.eq.s32.totalorder %s20, 0
    %p125 = por %p123, %p124
    %p126 = scmp.ne.s32.totalorder %s112, %s113
    %p127 = scmp.eq.s32.totalorder %s21, 1
    %p128 = por %p126, %p127
    %p130 = scmp.ne.s32.totalorder %s113, %s129
    %p131 = scmp.eq.s32.totalorder %s21, 0
    %p132 = por %p130, %p131
    %s134 = sadd.s32 %s133, 1
    %p137 = scmp.eq.s32.totalorder %s15, 1
    %p138 = scmp.ne.s32.totalorder %s133, %s135
    %p139 = scmp.eq.s32.totalorder %s15, 0
    %p140 = por %p138, %p139
    %p141 = scmp.ne.s32.totalorder %s133, %s135
    %p142 = scmp.eq.s32.totalorder %s20, 1
    %p143 = por %p141, %p142
    %p144 = scmp.ne.s32.totalorder %s135, %s136
    %p145 = scmp.eq.s32.totalorder %s20, 0
    %p146 = por %p144, %p145
    %p147 = scmp.ne.s32.totalorder %s135, %s136
    %p148 = scmp.eq.s32.totalorder %s21, 1
    %p149 = por %p147, %p148
    %p151 = scmp.ne.s32.totalorder %s136, %s150
    %p152 = scmp.eq.s32.totalorder %s21, 0
    %p153 = por %p151, %p152
    %s155 = sadd.s32 %s154, 1
    %p158 = scmp.eq.s32.totalorder %s15, 1
    %p159 = scmp.ne.s32.totalorder %s154, %s156
    %p160 = scmp.eq.s32.totalorder %s15, 0
    %p161 = por %p159, %p160
    %p162 = scmp.ne.s32.totalorder %s154, %s156
    %p163 = scmp.eq.s32.totalorder %s20, 1
    %p164 = por %p162, %p163
    %p165 = scmp.ne.s32.totalorder %s156, %s157
    %p166 = scmp.eq.s32.totalorder %s20, 0
    %p167 = por %p165, %p166
    %p168 = scmp.ne.s32.totalorder %s156, %s157
    %p169 = scmp.eq.s32.totalorder %s21, 1
    %p170 = por %p168, %p169
    %p172 = scmp.ne.s32.totalorder %s157, %s171
    %p173 = scmp.eq.s32.totalorder %s21, 0
    %p174 = por %p172, %p173
    %s176 = sadd.s32 %s175, 1
    %p179 = scmp.eq.s32.totalorder %s15, 1
    %p180 = scmp.ne.s32.totalorder %s175, %s177
    %p181 = scmp.eq.s32.totalorder %s15, 0
    %p182 = por %p180, %p181
    %p183 = scmp.ne.s32.totalorder %s175, %s177
    %p184 = scmp.eq.s32.totalorder %s20, 1
    %p185 = por %p183, %p184
    %p186 = scmp.ne.s32.totalorder %s177, %s178
    %p187 = scmp.eq.s32.totalorder %s20, 0
    %p188 = por %p186, %p187
    %p189 = scmp.ne.s32.totalorder %s177, %s178
    %p190 = scmp.eq.s32.totalorder %s21, 1
    %p191 = por %p189, %p190
    %p193 = scmp.ne.s32.totalorder %s178, %s192
    %p194 = scmp.eq.s32.totalorder %s21, 0
    %p195 = por %p193, %p194
    %s196 = ssub.s32 %s22, %s34
    %s197 = ssub.s32 %s23, %s30
    %s198 = sor.u32 %s196, %s197
    %p199 = scmp.eq.s32.totalorder %s198, 0
    %s201 = sadd.s32 %s200, 1
    %s202 = scalar_select %p199, %s200, %s201
    %p205 = pneg %p199
    %p206 = scmp.eq.s32.totalorder %s15, 1
    %p207 = por %p205, %p206
    %p208 = scmp.ne.s32.totalorder %s200, %s203
    %p209 = scmp.eq.s32.totalorder %s15, 0
    %p210 = por %p208, %p209
    %p211 = scmp.ne.s32.totalorder %s200, %s203
    %p212 = scmp.eq.s32.totalorder %s20, 1
    %p213 = por %p211, %p212
    %p214 = scmp.ne.s32.totalorder %s203, %s204
    %p215 = scmp.eq.s32.totalorder %s20, 0
    %p216 = por %p214, %p215
    %p217 = scmp.ne.s32.totalorder %s203, %s204
    %p218 = scmp.eq.s32.totalorder %s21, 1
    %p219 = por %p217, %p218
    %p221 = scmp.ne.s32.totalorder %s204, %s220
    %p222 = scmp.eq.s32.totalorder %s21, 0
    %p223 = por %p221, %p222
    %p224 = scmp.le.s32.totalorder 1, %s15
    %p225 = scmp.lt.s32.totalorder %s15, 3
    %p226 = pnand %p224, %p225
    %p227 = pneg %p226
    // Predicated region
    $region9: #{wcrw_forward.3} parent=5 // pred_check
      _
    $region10: #{wcrw_forward.3} parent=5 // pred_check_branch
      %229 = sbr.rel (%p226) target = $region12
    $region11: #{wcrw_forward.3} parent=5 // pred_region
      %s230 = ssub.s32 %s15, 1
      // Predicated region
      $region13: #{wcrw_forward.3} parent=11 // pred_check
        %p231 = pneg %p76
      $region14: #{wcrw_forward.3} parent=11 // pred_check_branch
        %233 = sbr.rel (%p231) target = $region16
      $region15: #{wcrw_forward.3} parent=11 // pred_region
        _
      $region16: #{wcrw_forward.3} parent=11 // pred_fallthru
        _
      // Predicated region
      $region17: #{wcrw_forward.3} parent=11 // pred_check
        %p234 = pneg %p97
      $region18: #{wcrw_forward.3} parent=11 // pred_check_branch
        %236 = sbr.rel (%p234) target = $region20
      $region19: #{wcrw_forward.3} parent=11 // pred_region
        _
      $region20: #{wcrw_forward.3} parent=11 // pred_fallthru
        _
      // Predicated region
      $region21: #{wcrw_forward.3} parent=11 // pred_check
        %p237 = pneg %p146
      $region22: #{wcrw_forward.3} parent=11 // pred_check_branch
        %239 = sbr.rel (%p237) target = $region24
      $region23: #{wcrw_forward.3} parent=11 // pred_region
        _
      $region24: #{wcrw_forward.3} parent=11 // pred_fallthru
        _
      // Predicated region
      $region25: #{wcrw_forward.3} parent=11 // pred_check
        %p240 = pneg %p167
      $region26: #{wcrw_forward.3} parent=11 // pred_check_branch
        %242 = sbr.rel (%p240) target = $region28
      $region27: #{wcrw_forward.3} parent=11 // pred_region
        _
      $region28: #{wcrw_forward.3} parent=11 // pred_fallthru
        _
      // Predicated region
      $region29: #{wcrw_forward.3} parent=11 // pred_check
        %p243 = pneg %p188
      $region30: #{wcrw_forward.3} parent=11 // pred_check_branch
        %245 = sbr.rel (%p243) target = $region32
      $region31: #{wcrw_forward.3} parent=11 // pred_region
        _
      $region32: #{wcrw_forward.3} parent=11 // pred_fallthru
        _
    $region12: #{wcrw_forward.3} parent=5 // pred_fallthru
      _
    %p246 = scmp.lt.s32.totalorder %s15, 2
    // Predicated region
    $region33: #{wcrw_forward.3} parent=5 // pred_check
      %p247 = pneg %p246
    $region34: #{wcrw_forward.3} parent=5 // pred_check_branch
      %249 = sbr.rel (%p247) target = $region36
    $region35: #{wcrw_forward.3} parent=5 // pred_region
      // Predicated region
      $region37: #{wcrw_forward.3} parent=35 // pred_check
        %p250 = pneg %p49
      $region38: #{wcrw_forward.3} parent=35 // pred_check_branch
        %252 = sbr.rel (%p250) target = $region40
      $region39: #{wcrw_forward.3} parent=35 // pred_region
        %s253 = smul.u32 2, %s23
        %p254 = scmp.lt.s32.totalorder %s22, 1
        %s255 = scalar_select %p254, %s22, 1
        %p256 = scmp.lt.s32.totalorder %s253, 1
        %s257 = scalar_select %p256, %s253, 1
        %s258 = smul.addr %s255, 36
        %s259 = sadd.s32 %s257, %s258
        %s260 = smul.addr %s259, 4
        %s261 = scalar_lea.vmem %s0, %s260
        %s262 = smul.u32 2, %s23
      $region40: #{wcrw_forward.3} parent=35 // pred_fallthru
        _
      // Predicated region
      $region41: #{wcrw_forward.3} parent=35 // pred_check
        %p263 = pneg %p119
      $region42: #{wcrw_forward.3} parent=35 // pred_check_branch
        %265 = sbr.rel (%p263) target = $region44
      $region43: #{wcrw_forward.3} parent=35 // pred_region
        %s266 = smul.u32 2, %s23
        %p267 = scmp.lt.s32.totalorder %s22, 1
        %s268 = scalar_select %p267, %s22, 1
        %p269 = scmp.lt.s32.totalorder %s266, 1
        %s270 = scalar_select %p269, %s266, 1
        %s271 = smul.addr %s268, 8
        %s272 = sadd.s32 %s270, %s271
        %s273 = smul.addr %s272, 4
        %s274 = scalar_lea.vmem %s3, %s273
        %s275 = smul.u32 2, %s23
      $region44: #{wcrw_forward.3} parent=35 // pred_fallthru
        _
    $region36: #{wcrw_forward.3} parent=5 // pred_fallthru
      _
    %p276 = scmp.le.s32.totalorder 1, %s15
    %p277 = scmp.lt.s32.totalorder %s15, 3
    %p278 = pnand %p276, %p277
    %p279 = pneg %p278
    // Predicated region
    $region45: #{wcrw_forward.3} parent=5 // pred_check
      _
    $region46: #{wcrw_forward.3} parent=5 // pred_check_branch
      %281 = sbr.rel (%p278) target = $region48
    $region47: #{wcrw_forward.3} parent=5 // pred_region
      %s282 = ssub.s32 %s15, 1
      %s283 = smul.u32 2, %s25
      %p284 = scmp.lt.s32.totalorder %s24, 1
      %s285 = scalar_select %p284, %s24, 1
      %p286 = scmp.lt.s32.totalorder %s283, 1
      %s287 = scalar_select %p286, %s283, 1
      %s288 = smul.addr %s285, 36
      %s289 = sadd.s32 %s287, %s288
      %s290 = smul.addr %s289, 4
      %s291 = scalar_lea.vmem %s0, %s290
      %p292 = pneg %p55
      %p293 = pneg %p52
      %p294 = pneg %p76
      %p295 = pneg %p73
      %p296 = pneg %p97
      %p297 = pneg %p94
      %s298 = smul.u32 2, %s25
      %p299 = scmp.lt.s32.totalorder %s24, 1
      %s300 = scalar_select %p299, %s24, 1
      %p301 = scmp.lt.s32.totalorder %s298, 1
      %s302 = scalar_select %p301, %s298, 1
      %s303 = smul.addr %s300, 8
      %s304 = sadd.s32 %s302, %s303
      %s305 = smul.addr %s304, 4
      %s306 = scalar_lea.vmem %s3, %s305
      %p307 = pneg %p125
      %p308 = pneg %p122
      %p309 = pneg %p146
      %p310 = pneg %p143
      %p311 = pneg %p167
      %p312 = pneg %p164
      %p313 = pneg %p188
      %p314 = pneg %p185
      %p315 = pneg %p216
      %p316 = pneg %p213
      %s317 = smul.u32 2, %s25
      %p318 = scmp.lt.s32.totalorder %s24, 1
      %s319 = scalar_select %p318, %s24, 1
      %p320 = scmp.lt.s32.totalorder %s317, 1
      %s321 = scalar_select %p320, %s317, 1
      %s322 = smul.addr %s319, 4
      %s323 = sadd.s32 %s321, %s322
      %s324 = smul.addr %s323, 8
      %s325 = scalar_lea.vmem %s7, %s324
      %s326 = smul.u32 2, %s25
      %p327 = scmp.lt.s32.totalorder %s24, 1
      %s328 = scalar_select %p327, %s24, 1
      %p329 = scmp.lt.s32.totalorder %s326, 1
      %s330 = scalar_select %p329, %s326, 1
      %s331 = smul.addr %s328, 36
      %s332 = sadd.s32 %s330, %s331
      %s333 = smul.addr %s332, 4
      %s334 = scalar_lea.vmem %s0, %s333
      %s335 = smul.u32 2, %s25
      %s336 = smul.u32 2, %s25
      %p337 = scmp.lt.s32.totalorder %s24, 1
      %s338 = scalar_select %p337, %s24, 1
      %p339 = scmp.lt.s32.totalorder %s336, 1
      %s340 = scalar_select %p339, %s336, 1
      %s341 = smul.addr %s338, 8
      %s342 = sadd.s32 %s340, %s341
      %s343 = smul.addr %s342, 4
      %s344 = scalar_lea.vmem %s3, %s343
      %s345 = smul.u32 2, %s25
      %s346 = smul.u32 2, %s25
      %p347 = scmp.lt.s32.totalorder %s24, 1
      %s348 = scalar_select %p347, %s24, 1
      %p349 = scmp.lt.s32.totalorder %s346, 1
      %s350 = scalar_select %p349, %s346, 1
      %s351 = smul.addr %s348, 4
      %s352 = sadd.s32 %s350, %s351
      %s353 = smul.addr %s352, 8
      %s354 = scalar_lea.vmem %s7, %s353
      %s355 = smul.u32 2, %s25
      %v357 = vld [vmem:[%s1] sm:$0xff]
      %v358 = vld [vmem:[%s1 + $0x8] sm:$0xff]
      %v359 = vld [vmem:[%s334] sm:$0xff]
      %v360 = vld [vmem:[%s334 + $0x8] sm:$0xff]
      %v361 = vld [vmem:[%s334 + $0x10] sm:$0xff]
      %v362 = vld [vmem:[%s334 + $0x18] sm:$0xff]
      %v363 = vld [vmem:[%s334 + $0x20] sm:$0xff]
      %v364 = vld [vmem:[%s334 + $0x28] sm:$0xff]
      %v365 = vld [vmem:[%s334 + $0x30] sm:$0xff]
      %v366 = vld [vmem:[%s334 + $0x38] sm:$0xff]
      %v367 = vld [vmem:[%s334 + $0x40] sm:$0xff]
      %v368 = vld [vmem:[%s334 + $0x48] sm:$0xff]
      %v369 = vld [vmem:[%s334 + $0x50] sm:$0xff]
      %v370 = vld [vmem:[%s334 + $0x58] sm:$0xff]
      %v371 = vld [vmem:[%s334 + $0x60] sm:$0xff]
      %v372 = vld [vmem:[%s334 + $0x68] sm:$0xff]
      %v373 = vld [vmem:[%s334 + $0x70] sm:$0xff]
      %v374 = vld [vmem:[%s334 + $0x78] sm:$0xff]
      %v375 = vld [vmem:[%s334 + $0x80] sm:$0xff]
      %v376 = vld [vmem:[%s334 + $0x88] sm:$0xff]
      %v377 = vld [vmem:[%s2] sm:$0xff]
      %v378 = vld [vmem:[%s2 + $0x8] sm:$0xff]
      %380 = vset.pattern.permute.xlu0 0
      %381 = vperm.xlu0 %380, %v377
      %v382 = vpop.permute.xlu0 %381
      %385 = vset.pattern.permute.xlu0 0
      %386 = vperm.xlu0 %385, %v378
      %v387 = vpop.permute.xlu0 %386
      %v391 = vunpack.c.l.b16 %v357
      %v392 = vunpack.c.h.b16 %v357
      %v393 = vunpack.c.l.b16 %v358
      %v394 = vunpack.c.h.b16 %v358
      %v395 = vpack.c.b16 %v393, %v391
      %v396 = vpack.c.b16 %v394, %v392
      %v416 = vunpack.c.l.b16 %v359
      %v417 = vunpack.c.h.b16 %v359
      %v418 = vunpack.c.l.b16 %v360
      %v419 = vunpack.c.h.b16 %v360
      %v420 = vunpack.c.l.b16 %v361
      %v421 = vunpack.c.h.b16 %v361
      %v422 = vunpack.c.l.b16 %v362
      %v423 = vunpack.c.h.b16 %v362
      %v424 = vunpack.c.l.b16 %v363
      %v425 = vunpack.c.h.b16 %v363
      %v426 = vunpack.c.l.b16 %v364
      %v427 = vunpack.c.h.b16 %v364
      %v428 = vunpack.c.l.b16 %v365
      %v429 = vunpack.c.h.b16 %v365
      %v430 = vunpack.c.l.b16 %v366
      %v431 = vunpack.c.h.b16 %v366
      %v432 = vunpack.c.l.b16 %v367
      %v433 = vunpack.c.h.b16 %v367
      %v434 = vunpack.c.l.b16 %v368
      %v435 = vunpack.c.h.b16 %v368
      %v436 = vunpack.c.l.b16 %v369
      %v437 = vunpack.c.h.b16 %v369
      %v438 = vunpack.c.l.b16 %v370
      %v439 = vunpack.c.h.b16 %v370
      %v440 = vunpack.c.l.b16 %v371
      %v441 = vunpack.c.h.b16 %v371
      %v442 = vunpack.c.l.b16 %v372
      %v443 = vunpack.c.h.b16 %v372
      %v444 = vunpack.c.l.b16 %v373
      %v445 = vunpack.c.h.b16 %v373
      %v446 = vunpack.c.l.b16 %v374
      %v447 = vunpack.c.h.b16 %v374
      %v448 = vunpack.c.l.b16 %v375
      %v449 = vunpack.c.h.b16 %v375
      %v450 = vunpack.c.l.b16 %v376
      %v451 = vunpack.c.h.b16 %v376
      %v452 = vpack.c.b16 %v418, %v416
      %v453 = vpack.c.b16 %v419, %v417
      %v454 = vpack.c.b16 %v422, %v420
      %v455 = vpack.c.b16 %v423, %v421
      %v456 = vpack.c.b16 %v426, %v424
      %v457 = vpack.c.b16 %v427, %v425
      %v458 = vpack.c.b16 %v430, %v428
      %v459 = vpack.c.b16 %v431, %v429
      %v460 = vpack.c.b16 %v434, %v432
      %v461 = vpack.c.b16 %v435, %v433
      %v462 = vpack.c.b16 %v438, %v436
      %v463 = vpack.c.b16 %v439, %v437
      %v464 = vpack.c.b16 %v442, %v440
      %v465 = vpack.c.b16 %v443, %v441
      %v466 = vpack.c.b16 %v446, %v444
      %v467 = vpack.c.b16 %v447, %v445
      %v468 = vpack.c.b16 %v450, %v448
      %v469 = vpack.c.b16 %v451, %v449
      %vm488 = vcmask 130048
      %v490 = vsel %vm488, %v396, 0
      %492 = vmatprep.subr.bf16.mxu0 %v453
      %493 = vmatpush1.bf16.msra.mxu0 %v452
      %494 = vmatprep.subr.bf16.mxu0 %v455
      %495 = vmatpush1.bf16.msra.mxu0 %v454
      %496 = vmatprep.subr.bf16.mxu0 %v457
      %497 = vmatpush1.bf16.msra.mxu0 %v456
      %498 = vmatprep.subr.bf16.mxu0 %v459
      %499 = vmatpush1.bf16.msra.mxu0 %v458
      %500 = vmatprep.subr.bf16.mxu0 %v461
      %501 = vmatpush1.bf16.msra.mxu0 %v460
      %502 = vmatprep.subr.bf16.mxu0 %v463
      %503 = vmatpush1.bf16.msra.mxu0 %v462
      %504 = vmatprep.subr.bf16.mxu0 %v465
      %505 = vmatpush1.bf16.msra.mxu0 %v464
      %506 = vmatprep.subr.bf16.mxu0 %v467
      %507 = vmatpush1.bf16.msra.mxu0 %v466
      %508 = vmatprep.subr.bf16.mxu0 %v469
      %509 = vmatpush1.bf16.msra.mxu0 %v468
      %510 = vmatprep.subr.bf16.mxu0 0
      %511 = vmatpush1.bf16.msra.mxu0 0
      %512 = vmatprep.subr.bf16.mxu0 0
      %513 = vmatpush1.bf16.msra.mxu0 0
      %514 = vmatprep.subr.bf16.mxu0 0
      %515 = vmatpush1.bf16.msra.mxu0 0
      %516 = vmatprep.subr.bf16.mxu0 0
      %517 = vmatpush1.bf16.msra.mxu0 0
      %518 = vmatprep.subr.bf16.mxu0 0
      %519 = vmatpush1.bf16.msra.mxu0 0
      %520 = vmatprep.subr.bf16.mxu0 0
      %521 = vmatpush1.bf16.msra.mxu0 0
      %522 = vmatprep.subr.bf16.mxu0 0
      %523 = vmatpush1.bf16.msra.mxu0 0
      %524 = vmatprep.mubr.bf16.mxu0 %v490
      %525 = vmatmul.mubr.bf16.gmra.mrb[0].mxu0 %v395
      %v526 = vpop.f32.mrb[0].mxu0
      %v527 = vadd.f32 %v382, %v526
      %v528 = vpop.f32.mrb[0].mxu0
      %v529 = vadd.f32 %v382, %v528
      %v530 = vpop.f32.mrb[0].mxu0
      %v531 = vadd.f32 %v387, %v530
      %v532 = vpop.f32.mrb[0].mxu0
      %v533 = vadd.f32 %v387, %v532
      %534 = vdwg.mxu0
      %v535 = vld [vmem:[%s4] sm:$0xf]
      %v536 = vld [vmem:[%s4 + $0x4] sm:$0xf]
      %v537 = vld [vmem:[%s344] sm:$0xff]
      %v538 = vld [vmem:[%s344 + $0x8] sm:$0xff]
      %v539 = vld [vmem:[%s344 + $0x10] sm:$0xff]
      %v540 = vld [vmem:[%s344 + $0x18] sm:$0xff]
      %v541 = vld [vmem:[%s5] sm:$0xff]
      %v542 = vld [vmem:[%s5 + $0x8] sm:$0xff]
      %544 = vset.pattern.permute.xlu0 0
      %545 = vperm.xlu0 %544, %v541
      %v546 = vpop.permute.xlu0 %545
      %549 = vset.pattern.permute.xlu0 0
      %550 = vperm.xlu0 %549, %v542
      %v551 = vpop.permute.xlu0 %550
      %v555 = vunpack.c.l.b16 %v535
      %v556 = vunpack.c.l.b16 %v536
      %v557 = vpack.c.b16 %v556, %v555
      %v562 = vunpack.c.l.b16 %v537
      %v563 = vunpack.c.h.b16 %v537
      %v564 = vunpack.c.l.b16 %v538
      %v565 = vunpack.c.h.b16 %v538
      %v566 = vunpack.c.l.b16 %v539
      %v567 = vunpack.c.h.b16 %v539
      %v568 = vunpack.c.l.b16 %v540
      %v569 = vunpack.c.h.b16 %v540
      %v570 = vpack.c.b16 %v564, %v562
      %v571 = vpack.c.b16 %v565, %v563
      %v572 = vpack.c.b16 %v568, %v566
      %v573 = vpack.c.b16 %v569, %v567
      %vm578 = vcmask 261120
      %v580 = vsel %vm578, %v557, 0
      %582 = vmatprep.subr.bf16.mxu0 %v571
      %583 = vmatpush1.bf16.msra.mxu0 %v570
      %584 = vmatprep.subr.bf16.mxu0 %v573
      %585 = vmatpush1.bf16.msra.mxu0 %v572
      %586 = vmatprep.subr.bf16.mxu0 0
      %587 = vmatpush1.bf16.msra.mxu0 0
      %588 = vmatprep.subr.bf16.mxu0 0
      %589 = vmatpush1.bf16.msra.mxu0 0
      %590 = vmatprep.subr.bf16.mxu0 0
      %591 = vmatpush1.bf16.msra.mxu0 0
      %592 = vmatprep.subr.bf16.mxu0 0
      %593 = vmatpush1.bf16.msra.mxu0 0
      %594 = vmatprep.subr.bf16.mxu0 0
      %595 = vmatpush1.bf16.msra.mxu0 0
      %596 = vmatprep.subr.bf16.mxu0 0
      %597 = vmatpush1.bf16.msra.mxu0 0
      %598 = vmatprep.subr.bf16.mxu0 0
      %599 = vmatpush1.bf16.msra.mxu0 0
      %600 = vmatprep.subr.bf16.mxu0 0
      %601 = vmatpush1.bf16.msra.mxu0 0
      %602 = vmatprep.subr.bf16.mxu0 0
      %603 = vmatpush1.bf16.msra.mxu0 0
      %604 = vmatprep.subr.bf16.mxu0 0
      %605 = vmatpush1.bf16.msra.mxu0 0
      %606 = vmatprep.subr.bf16.mxu0 0
      %607 = vmatpush1.bf16.msra.mxu0 0
      %608 = vmatprep.subr.bf16.mxu0 0
      %609 = vmatpush1.bf16.msra.mxu0 0
      %610 = vmatprep.subr.bf16.mxu0 0
      %611 = vmatpush1.bf16.msra.mxu0 0
      %612 = vmatprep.subr.bf16.mxu0 0
      %613 = vmatpush1.bf16.msra.mxu0 0
      %614 = vmatprep.mubr.bf16.mxu0 0
      %615 = vmatmul.mubr.bf16.gmra.mrb[0].mxu0 %v580
      %v616 = vpop.f32.mrb[0].mxu0
      %v617 = vadd.f32 %v546, %v616
      %v618 = vpop.f32.mrb[0].mxu0
      %v619 = vadd.f32 %v546, %v618
      %v620 = vpop.f32.mrb[0].mxu0
      %v621 = vadd.f32 %v551, %v620
      %v622 = vpop.f32.mrb[0].mxu0
      %v623 = vadd.f32 %v551, %v622
      %624 = vdwg.mxu0
      %v625 = vmax.f32 %v617, 0.0
      %v626 = vmax.f32 %v619, 0.0
      %v627 = vmax.f32 %v621, 0.0
      %v628 = vmax.f32 %v623, 0.0
      %v629 = vld [vmem:[#allocation2] sm:$0x1]
      %v631 = vlaneseq
      %v632 = vshrl.u32 %v631, 7
      %v633 = vsub.s32 0, %v632
      %v634 = vrot.slane %v629, %v633
      %635 = vset.pattern.permute.xlu0 0
      %636 = vperm.xlu0 %635, %v634
      %v637 = vpop.permute.xlu0 %636
      %v639 = vmul.f32 %v625, %v637
      %v640 = vmul.f32 %v626, %v637
      %v641 = vmul.f32 %v627, %v637
      %v642 = vmul.f32 %v628, %v637
      %v643 = vadd.f32 %v527, %v639
      %v644 = vadd.f32 %v529, %v640
      %v645 = vadd.f32 %v531, %v641
      %v646 = vadd.f32 %v533, %v642
      %647 = vst [vmem:[%s354] sm:$0xff] %v643
      %648 = vst [vmem:[%s354 + $0x8] sm:$0xff] %v644
      %649 = vst [vmem:[%s354 + $0x10] sm:$0xff] %v645
      %650 = vst [vmem:[%s354 + $0x18] sm:$0xff] %v646
      %s651 = smul.u32 2, %s25
      %p652 = scmp.lt.s32.totalorder %s24, 1
      %s653 = scalar_select %p652, %s24, 1
      %p654 = scmp.lt.s32.totalorder %s651, 1
      %s655 = scalar_select %p654, %s651, 1
      %s656 = smul.addr %s653, 4
      %s657 = sadd.s32 %s655, %s656
      %s658 = smul.addr %s657, 8
      %s659 = scalar_lea.vmem %s7, %s658
      // Predicated region
      $region49: #{wcrw_forward.3} parent=47 // pred_check
        %p660 = pneg %p213
      $region50: #{wcrw_forward.3} parent=47 // pred_check_branch
        %662 = sbr.rel (%p660) target = $region52
      $region51: #{wcrw_forward.3} parent=47 // pred_region
        %s663 = smul.u32 2, %s25
      $region52: #{wcrw_forward.3} parent=47 // pred_fallthru
        _
    $region48: #{wcrw_forward.3} parent=5 // pred_fallthru
      _
    %p664 = scmp.le.s32.totalorder 2, %s15
    // Predicated region
    $region53: #{wcrw_forward.3} parent=5 // pred_check
      %p665 = pneg %p664
    $region54: #{wcrw_forward.3} parent=5 // pred_check_branch
      %667 = sbr.rel (%p665) target = $region56
    $region55: #{wcrw_forward.3} parent=5 // pred_region
      %s668 = ssub.s32 %s15, 2
      // Predicated region
      $region57: #{wcrw_forward.3} parent=55 // pred_check
        %p669 = pneg %p219
      $region58: #{wcrw_forward.3} parent=55 // pred_check_branch
        %671 = sbr.rel (%p669) target = $region60
      $region59: #{wcrw_forward.3} parent=55 // pred_region
        %s672 = smul.u32 2, %s27
        %p673 = scmp.lt.s32.totalorder %s26, 1
        %s674 = scalar_select %p673, %s26, 1
        %p675 = scmp.lt.s32.totalorder %s672, 1
        %s676 = scalar_select %p675, %s672, 1
        %s677 = smul.addr %s674, 4
        %s678 = sadd.s32 %s676, %s677
        %s679 = smul.addr %s678, 8
        %s680 = scalar_lea.vmem %s7, %s679
      $region60: #{wcrw_forward.3} parent=55 // pred_fallthru
        _
    $region56: #{wcrw_forward.3} parent=5 // pred_fallthru
      _
  $region6: #{wcrw_forward.3} parent=0 // loop_footer
    %s19 = sadd.s32 1, %s15
  $region7: #{wcrw_forward.3} parent=0 // loop_footer_branch
    %14 = sbr.rel target = $region3
  $region8: #{wcrw_forward.3} parent=0 // loop_exit
    _

</llo_original>
